<compile_context>
chip_gen: v7x
topology: tpu7x:2x2x1
jax: 0.10.0
libtpu: 0.0.40
codegen_flags: <defaults>
</compile_context>

<pallas_src>
import functools

import jax
import jax.numpy as jnp
from jax import lax
from jax.experimental import pallas as pl
from jax.experimental.pallas import tpu as pltpu

ATOM_FDIM = 16
BOND_FDIM = 8
HIDDEN = 32
DEPTH = 2


def _vmem():
    return pl.BlockSpec(memory_space=pltpu.MemorySpace.VMEM)


def _smem():
    return pl.BlockSpec(memory_space=pltpu.MemorySpace.SMEM)


def _dot(a, b):
    # f32 straight to the MXU; f32 accumulation via preferred_element_type.
    return jnp.dot(a, b, preferred_element_type=jnp.float32)


def _prelu(x, alpha):
    return jnp.where(x > 0, x, alpha * x)


def _weight_offsets(depth=DEPTH):
    """Row offsets of each layer inside the packed (rows, HIDDEN) weight slab.

    Order: W_i, W_h0..W_h{depth-1}, W_ah0..W_ah{depth-1}, W_o.
    Every offset is a multiple of 8, so static ref slices are tile-aligned.
    """
    sizes = [("W_i", ATOM_FDIM)]
    sizes += [(f"W_h{d}", HIDDEN + BOND_FDIM) for d in range(depth)]
    sizes += [("W_ah0", ATOM_FDIM)]
    sizes += [(f"W_ah{d}", HIDDEN) for d in range(1, depth)]
    sizes += [("W_o", 2 * HIDDEN)]
    offs, pos = {}, 0
    for name, rows in sizes:
        offs[name] = (pos, pos + rows)
        pos += rows
    return offs, pos


# ----------------------------------------------------------------------------
# Fused kernel: entire MPNEncoder.forward in one VMEM-resident invocation
# ----------------------------------------------------------------------------
def _mpn_fused_kernel(f_atoms_ref, f_bonds_ref, idx_ref, alphas_ref,
                      w_ref, b_ref, o_ref, *, depth, k_nei):
    n = f_atoms_ref.shape[0]
    nb, bfd = f_bonds_ref.shape
    hdim = HIDDEN
    offs, _ = _weight_offsets(depth)

    f_atoms = f_atoms_ref[...]
    # Padding bond (row 0) must be all-zero so padded a2b slots add nothing;
    # enforce it in-kernel instead of relying on the caller (BatchMolGraph).
    mask_b = (lax.broadcasted_iota(jnp.int32, (nb, bfd), 0) != 0).astype(jnp.float32)
    f_bonds = f_bonds_ref[...] * mask_b

    # Hoisted row-0 mask (self_message[0,:] = message[0,:] = 0): built once,
    # applied as a single multiply at each use.
    mask_h = (lax.broadcasted_iota(jnp.int32, (n, hdim), 0) != 0).astype(jnp.float32)

    # --- One-hot neighbor matrices: built ONCE, reused by every gather ------
    # sum_k x[a2a[n,k]]  ==  mat_a @ x   (duplicate indices double-count,
    # exactly matching index_select_ND(...).sum(dim=1); index 0 hits the
    # all-zero padding row).
    idx = idx_ref[...]                             # (n, 2*k_nei) = [a2a | a2b]
    iota_a = lax.broadcasted_iota(jnp.int32, (n, n), 1)
    iota_b = lax.broadcasted_iota(jnp.int32, (n, nb), 1)
    mat_a = jnp.zeros((n, n), jnp.float32)
    mat_b = jnp.zeros((n, nb), jnp.float32)
    for k in range(k_nei):                         # static unroll; k_nei small
        mat_a = mat_a + (idx[:, k:k + 1] == iota_a).astype(jnp.float32)
        mat_b = mat_b + (idx[:, k_nei + k:k_nei + k + 1] == iota_b).astype(jnp.float32)

    def wslab(name):
        s, e = offs[name]
        return w_ref[s:e, :]

    def bias(row):
        return b_ref[row:row + 1, :]

    # --- input = W_i(f_atoms); row-0 zero folded in --------------------------
    h = (_dot(f_atoms, wslab("W_i")) + bias(0)) * mask_h

    # Bond aggregation is loop-invariant (f_bonds never changes): compute once.
    agg_b = _dot(mat_b, f_bonds)                                   # (n, BF)

    # --- depth x message passing: W_h([sum h[a2a] ; sum f_bonds[a2b]]) -------
    # TODO(synk): once atom rows are batched (>=256), keep a persistent
    # (n_tile, H+BF) VMEM scratch and issue a single fused (H+BF)-wide dot per
    # depth step instead of the split below.
    for d in range(depth):
        s, e = offs[f"W_h{d}"]
        agg_h = _dot(mat_a, h)                                     # (n, H)
        # concat([agg_h, agg_b]) @ W  ==  agg_h @ W[:H] + agg_b @ W[H:]
        msg = (_dot(agg_h, w_ref[s:s + hdim, :])
               + _dot(agg_b, w_ref[s + hdim:e, :])
               + bias(1 + d))
        h = (h + msg) * mask_h

    # --- a_message = tune( sum_k h[a2a[n,k]] ) -------------------------------
    a_message = _prelu(_dot(mat_a, h), alphas_ref[0, 0])

    # --- cc = W_ah(f_atoms)  (Dropout(p=0) is identity) ----------------------
    cc = f_atoms
    for d in range(depth):
        cc = _prelu(_dot(cc, wslab(f"W_ah{d}")) + bias(1 + depth + d),
                    alphas_ref[0, 1 + d])

    # --- W_o(concat([cc, a_message])) without materializing the concat -------
    s, e = offs["W_o"]
    out = (_dot(cc, w_ref[s:s + hdim, :])
           + _dot(a_message, w_ref[s + hdim:e, :])
           + bias(1 + 2 * depth))
    o_ref[...] = _prelu(out, alphas_ref[0, 1 + depth])


# ----------------------------------------------------------------------------
# Host-side one-time packing: ~19 tiny arrays -> 3 slabs (6 kernel DMAs total)
# ----------------------------------------------------------------------------
def pack_params(params):
    w_rows = [params["W_i"][0]]
    b_rows = [params["W_i"][1]]
    for (w, b) in params["W_h"]:
        w_rows.append(w)
        b_rows.append(b)
    for (w, b, _) in params["W_ah"]:
        w_rows.append(w)
        b_rows.append(b)
    w_rows.append(params["W_o"][0])
    b_rows.append(params["W_o"][1])

    w_slab = jnp.concatenate(w_rows, axis=0).astype(jnp.float32)   # (208, H)
    b_slab = jnp.concatenate(b_rows, axis=0).astype(jnp.float32)   # (6, H)
    _, total_rows = _weight_offsets(DEPTH)
    assert w_slab.shape == (total_rows, HIDDEN)
    assert b_slab.shape == (2 + 2 * DEPTH, HIDDEN)

    # PReLU alphas packed into one small SMEM array: [tune, W_ah..., W_o]
    alphas = jnp.concatenate(
        [params["tune_alpha"].reshape(1, 1)]
        + [al.reshape(1, 1) for (_, _, al) in params["W_ah"]]
        + [params["W_o_alpha"].reshape(1, 1)], axis=1).astype(jnp.float32)
    return {"w": w_slab, "b": b_slab, "alphas": alphas}


# ----------------------------------------------------------------------------
# Wrapper: MPNEncoder.forward (MPN.forward minus the Python BatchMolGraph build)
# ----------------------------------------------------------------------------
@jax.jit
def mpn_forward(packed, f_atoms, f_bonds, a2a, a2b):
    n = f_atoms.shape[0]
    k_nei = a2a.shape[1]
    # Merge the two index tables into one int32 array: one DMA instead of two.
    idx = jnp.concatenate([a2a.astype(jnp.int32), a2b.astype(jnp.int32)], axis=1)

    kernel = functools.partial(_mpn_fused_kernel, depth=DEPTH, k_nei=k_nei)

    # TODO(synk): at production graph sizes, batch molecules to >=256 atom
    # rows, add a row-tile grid with dimension_semantics=("parallel",) (uses
    # both v7x TensorCores), replace the dense (n, n) one-hot gather with a
    # scalar-prefetched / DMA row gather, present a lane-dense (>=128-wide)
    # output slab, and set vmem_limit_bytes per generation (16/32/32 MiB
    # default scoped on v5e/v6e/v7x).
    return pl.pallas_call(
        kernel,
        out_shape=jax.ShapeDtypeStruct((n, HIDDEN), jnp.float32),
        in_specs=[_vmem(), _vmem(), _vmem(), _smem(), _vmem(), _vmem()],
        out_specs=_vmem(),
    )(f_atoms, f_bonds, idx, packed["alphas"], packed["w"], packed["b"])


# ----------------------------------------------------------------------------
# Pure-JAX reference (f32, HIGHEST precision) for a correctness self-check
# ----------------------------------------------------------------------------
def mpn_forward_ref(params, f_atoms, f_bonds, a2a, a2b):
    P = lax.Precision.HIGHEST

    def lin(x, w, b):
        return jnp.dot(x, w, precision=P) + b

    def prelu(x, a):
        return jnp.where(x > 0, x, a[0, 0] * x)

    h = lin(f_atoms, *params["W_i"]).at[0, :].set(0.0)
    for (w, b) in params["W_h"]:
        agg_h = jnp.take(h, a2a, axis=0).sum(axis=1)
        agg_b = jnp.take(f_bonds, a2b, axis=0).sum(axis=1)
        msg = lin(jnp.concatenate([agg_h, agg_b], axis=1), w, b)
        h = (h + msg).at[0, :].set(0.0)
    a_message = prelu(jnp.take(h, a2a, axis=0).sum(axis=1),
                      params["tune_alpha"])
    cc = f_atoms
    for (w, b, al) in params["W_ah"]:
        cc = prelu(lin(cc, w, b), al)
    out = lin(jnp.concatenate([cc, a_message], axis=1), *params["W_o"])
    return prelu(out, params["W_o_alpha"])


# ----------------------------------------------------------------------------
# Parameter init (deterministic, PyTorch-like uniform(-1/sqrt(fan_in), ...))
# ----------------------------------------------------------------------------
def init_linear(key, din, dout):
    kw, kb = jax.random.split(key)
    lim = 1.0 / float(din) ** 0.5
    w = jax.random.uniform(kw, (din, dout), jnp.float32, -lim, lim)
    b = jax.random.uniform(kb, (1, dout), jnp.float32, -lim, lim)
    return w, b


def init_params(key):
    keys = jax.random.split(key, 8 + DEPTH)
    alpha = jnp.full((1, 1), 0.25, jnp.float32)  # nn.PReLU default init
    params = {}
    params["W_i"] = init_linear(keys[0], ATOM_FDIM, HIDDEN)
    params["W_h"] = [init_linear(keys[1 + d], HIDDEN + BOND_FDIM, HIDDEN)
                     for d in range(DEPTH)]
    wah = [init_linear(keys[1 + DEPTH], ATOM_FDIM, HIDDEN) + (alpha,)]
    for d in range(DEPTH - 1):
        wah.append(init_linear(keys[2 + DEPTH + d], HIDDEN, HIDDEN) + (alpha,))
    params["W_ah"] = wah
    params["W_o"] = init_linear(keys[5 + DEPTH], 2 * HIDDEN, HIDDEN)
    params["tune_alpha"] = alpha
    params["W_o_alpha"] = alpha
    return params


if __name__ == "__main__":
    # TODO(synk): BatchMolGraph featurization (RDKit-style Python graph build)
    # is host-side data prep; synthetic graph tensors are constructed directly.
    key = jax.random.PRNGKey(0)
    k_feat_a, k_feat_b, k_a2a, k_a2b, k_param = jax.random.split(key, 5)

    N_ATOMS = 16   # 1 padding atom + 15 real atoms (2 molecules: 7 + 8)
    N_BONDS = 24   # 1 padding bond + 23 real bonds
    K_NEI = 4      # max neighbors per atom (rows padded with index 0)

    f_atoms = jax.random.normal(k_feat_a, (N_ATOMS, ATOM_FDIM), jnp.float32)
    f_atoms = f_atoms.at[0, :].set(0.0)        # padding row, as in BatchMolGraph
    f_bonds = jax.random.normal(k_feat_b, (N_BONDS, BOND_FDIM), jnp.float32)
    f_bonds = f_bonds.at[0, :].set(0.0)

    a2a = jax.random.randint(k_a2a, (N_ATOMS, K_NEI), 0, N_ATOMS, jnp.int32)
    a2a = a2a.at[0, :].set(0)
    a2b = jax.random.randint(k_a2b, (N_ATOMS, K_NEI), 0, N_BONDS, jnp.int32)
    a2b = a2b.at[0, :].set(0)
    a_scope = [(1, 7), (8, 8)]                 # (start, size) per molecule

    params = init_params(k_param)
    packed = pack_params(params)               # one-time host-side packing

    atom_hiddens = mpn_forward(packed, f_atoms, f_bonds, a2a, a2b)
    atom_hiddens = jax.block_until_ready(atom_hiddens)
    assert atom_hiddens.shape == (N_ATOMS, HIDDEN)
    assert atom_hiddens.dtype == jnp.float32

    # Correctness self-check vs. pure-JAX HIGHEST-precision reference.
    # Tolerance is tightened vs. the old bf16 version (1e-1 -> 5e-2/2e-2) while
    # still covering MXU f32 pass behavior across TPU generations.
    ref = mpn_forward_ref(params, f_atoms, f_bonds, a2a, a2b)
    max_err = float(jnp.max(jnp.abs(atom_hiddens - ref)))
    assert jnp.allclose(atom_hiddens, ref, rtol=2e-2, atol=5e-2), max_err

    _ = (atom_hiddens, a_scope)                # MPN returns (atom_hiddens, a_scope)
    print("KERNEL_OK")
</pallas_src>

<mosaic_0001>
module attributes {stable_mosaic.version = 11 : i64} {
  func.func @_mpn_fused_kernel(%arg0: memref<16x16xf32, #tpu.memory_space<vmem>>, %arg1: memref<24x8xf32, #tpu.memory_space<vmem>>, %arg2: memref<16x8xi32, #tpu.memory_space<vmem>>, %arg3: memref<1x4xf32, #tpu.memory_space<smem>>, %arg4: memref<208x32xf32, #tpu.memory_space<vmem>>, %arg5: memref<6x32xf32, #tpu.memory_space<vmem>>, %arg6: memref<16x32xf32, #tpu.memory_space<vmem>>) attributes {dimension_semantics = [], scalar_prefetch = 0 : i64, scratch_operands = 0 : i64, tpu.core_type = #tpu.core_type<tc>} {
    %c0 = arith.constant 0 : index
    %c0_0 = arith.constant 0 : index
    %0 = vector.load %arg0[%c0, %c0_0] : memref<16x16xf32, #tpu.memory_space<vmem>>, vector<16x16xf32>
    %1 = tpu.iota {dimensions = array<i32: 0>} : vector<24x8xi32>
    %c0_i32 = arith.constant 0 : i32
    %2 = vector.broadcast %c0_i32 : i32 to vector<24x8xi32>
    %3 = arith.cmpi ne, %1, %2 : vector<24x8xi32>
    %4 = arith.extui %3 : vector<24x8xi1> to vector<24x8xi32>
    %5 = arith.sitofp %4 : vector<24x8xi32> to vector<24x8xf32>
    %c0_1 = arith.constant 0 : index
    %c0_2 = arith.constant 0 : index
    %6 = vector.load %arg1[%c0_1, %c0_2] : memref<24x8xf32, #tpu.memory_space<vmem>>, vector<24x8xf32>
    %7 = arith.mulf %6, %5 : vector<24x8xf32>
    %8 = tpu.iota {dimensions = array<i32: 0>} : vector<16x32xi32>
    %c0_i32_3 = arith.constant 0 : i32
    %9 = vector.broadcast %c0_i32_3 : i32 to vector<16x32xi32>
    %10 = arith.cmpi ne, %8, %9 : vector<16x32xi32>
    %11 = arith.extui %10 : vector<16x32xi1> to vector<16x32xi32>
    %12 = arith.sitofp %11 : vector<16x32xi32> to vector<16x32xf32>
    %c0_4 = arith.constant 0 : index
    %c0_5 = arith.constant 0 : index
    %13 = vector.load %arg2[%c0_4, %c0_5] : memref<16x8xi32, #tpu.memory_space<vmem>>, vector<16x8xi32>
    %14 = tpu.iota {dimensions = array<i32: 1>} : vector<16x16xi32>
    %15 = tpu.iota {dimensions = array<i32: 1>} : vector<16x24xi32>
    %cst = arith.constant 0.000000e+00 : f32
    %16 = vector.broadcast %cst : f32 to vector<16x16xf32>
    %cst_6 = arith.constant 0.000000e+00 : f32
    %17 = vector.broadcast %cst_6 : f32 to vector<16x24xf32>
    %18 = vector.extract_strided_slice %13 {offsets = [0, 0], sizes = [16, 1], strides = [1, 1]} : vector<16x8xi32> to vector<16x1xi32>
    %19 = vector.broadcast %18 : vector<16x1xi32> to vector<16x16xi32>
    %20 = arith.cmpi eq, %19, %14 : vector<16x16xi32>
    %21 = arith.extui %20 : vector<16x16xi1> to vector<16x16xi32>
    %22 = arith.sitofp %21 : vector<16x16xi32> to vector<16x16xf32>
    %23 = arith.addf %16, %22 : vector<16x16xf32>
    %24 = vector.extract_strided_slice %13 {offsets = [0, 4], sizes = [16, 1], strides = [1, 1]} : vector<16x8xi32> to vector<16x1xi32>
    %25 = vector.broadcast %24 : vector<16x1xi32> to vector<16x24xi32>
    %26 = arith.cmpi eq, %25, %15 : vector<16x24xi32>
    %27 = arith.extui %26 : vector<16x24xi1> to vector<16x24xi32>
    %28 = arith.sitofp %27 : vector<16x24xi32> to vector<16x24xf32>
    %29 = arith.addf %17, %28 : vector<16x24xf32>
    %30 = vector.extract_strided_slice %13 {offsets = [0, 1], sizes = [16, 1], strides = [1, 1]} : vector<16x8xi32> to vector<16x1xi32>
    %31 = vector.broadcast %30 : vector<16x1xi32> to vector<16x16xi32>
    %32 = arith.cmpi eq, %31, %14 : vector<16x16xi32>
    %33 = arith.extui %32 : vector<16x16xi1> to vector<16x16xi32>
    %34 = arith.sitofp %33 : vector<16x16xi32> to vector<16x16xf32>
    %35 = arith.addf %23, %34 : vector<16x16xf32>
    %36 = vector.extract_strided_slice %13 {offsets = [0, 5], sizes = [16, 1], strides = [1, 1]} : vector<16x8xi32> to vector<16x1xi32>
    %37 = vector.broadcast %36 : vector<16x1xi32> to vector<16x24xi32>
    %38 = arith.cmpi eq, %37, %15 : vector<16x24xi32>
    %39 = arith.extui %38 : vector<16x24xi1> to vector<16x24xi32>
    %40 = arith.sitofp %39 : vector<16x24xi32> to vector<16x24xf32>
    %41 = arith.addf %29, %40 : vector<16x24xf32>
    %42 = vector.extract_strided_slice %13 {offsets = [0, 2], sizes = [16, 1], strides = [1, 1]} : vector<16x8xi32> to vector<16x1xi32>
    %43 = vector.broadcast %42 : vector<16x1xi32> to vector<16x16xi32>
    %44 = arith.cmpi eq, %43, %14 : vector<16x16xi32>
    %45 = arith.extui %44 : vector<16x16xi1> to vector<16x16xi32>
    %46 = arith.sitofp %45 : vector<16x16xi32> to vector<16x16xf32>
    %47 = arith.addf %35, %46 : vector<16x16xf32>
    %48 = vector.extract_strided_slice %13 {offsets = [0, 6], sizes = [16, 1], strides = [1, 1]} : vector<16x8xi32> to vector<16x1xi32>
    %49 = vector.broadcast %48 : vector<16x1xi32> to vector<16x24xi32>
    %50 = arith.cmpi eq, %49, %15 : vector<16x24xi32>
    %51 = arith.extui %50 : vector<16x24xi1> to vector<16x24xi32>
    %52 = arith.sitofp %51 : vector<16x24xi32> to vector<16x24xf32>
    %53 = arith.addf %41, %52 : vector<16x24xf32>
    %54 = vector.extract_strided_slice %13 {offsets = [0, 3], sizes = [16, 1], strides = [1, 1]} : vector<16x8xi32> to vector<16x1xi32>
    %55 = vector.broadcast %54 : vector<16x1xi32> to vector<16x16xi32>
    %56 = arith.cmpi eq, %55, %14 : vector<16x16xi32>
    %57 = arith.extui %56 : vector<16x16xi1> to vector<16x16xi32>
    %58 = arith.sitofp %57 : vector<16x16xi32> to vector<16x16xf32>
    %59 = arith.addf %47, %58 : vector<16x16xf32>
    %60 = vector.extract_strided_slice %13 {offsets = [0, 7], sizes = [16, 1], strides = [1, 1]} : vector<16x8xi32> to vector<16x1xi32>
    %61 = vector.broadcast %60 : vector<16x1xi32> to vector<16x24xi32>
    %62 = arith.cmpi eq, %61, %15 : vector<16x24xi32>
    %63 = arith.extui %62 : vector<16x24xi1> to vector<16x24xi32>
    %64 = arith.sitofp %63 : vector<16x24xi32> to vector<16x24xf32>
    %65 = arith.addf %53, %64 : vector<16x24xf32>
    %c0_7 = arith.constant 0 : index
    %c0_8 = arith.constant 0 : index
    %66 = vector.load %arg4[%c0_7, %c0_8] : memref<208x32xf32, #tpu.memory_space<vmem>>, vector<16x32xf32>
    %cst_9 = arith.constant dense<0.000000e+00> : vector<16x32xf32>
    %67 = tpu.matmul %0, %66, %cst_9 {dimension_numbers = #tpu.dot_dimension_numbers<[1], [0], [0], [1], [0, 0, 1, 1], [], []>} : vector<16x16xf32>, vector<16x32xf32>, vector<16x32xf32> -> vector<16x32xf32>
    %c0_10 = arith.constant 0 : index
    %c0_11 = arith.constant 0 : index
    %68 = vector.load %arg5[%c0_10, %c0_11] : memref<6x32xf32, #tpu.memory_space<vmem>>, vector<1x32xf32>
    %69 = vector.broadcast %68 : vector<1x32xf32> to vector<16x32xf32>
    %70 = arith.addf %67, %69 : vector<16x32xf32>
    %71 = arith.mulf %70, %12 : vector<16x32xf32>
    %cst_12 = arith.constant dense<0.000000e+00> : vector<16x8xf32>
    %72 = tpu.matmul %65, %7, %cst_12 {dimension_numbers = #tpu.dot_dimension_numbers<[1], [0], [0], [1], [0, 0, 1, 1], [], []>} : vector<16x24xf32>, vector<24x8xf32>, vector<16x8xf32> -> vector<16x8xf32>
    %cst_13 = arith.constant dense<0.000000e+00> : vector<16x32xf32>
    %73 = tpu.matmul %59, %71, %cst_13 {dimension_numbers = #tpu.dot_dimension_numbers<[1], [0], [0], [1], [0, 0, 1, 1], [], []>} : vector<16x16xf32>, vector<16x32xf32>, vector<16x32xf32> -> vector<16x32xf32>
    %c16 = arith.constant 16 : index
    %c0_14 = arith.constant 0 : index
    %74 = vector.load %arg4[%c16, %c0_14] : memref<208x32xf32, #tpu.memory_space<vmem>>, vector<32x32xf32>
    %cst_15 = arith.constant dense<0.000000e+00> : vector<16x32xf32>
    %75 = tpu.matmul %73, %74, %cst_15 {dimension_numbers = #tpu.dot_dimension_numbers<[1], [0], [0], [1], [0, 0, 1, 1], [], []>} : vector<16x32xf32>, vector<32x32xf32>, vector<16x32xf32> -> vector<16x32xf32>
    %c48 = arith.constant 48 : index
    %c0_16 = arith.constant 0 : index
    %76 = vector.load %arg4[%c48, %c0_16] : memref<208x32xf32, #tpu.memory_space<vmem>>, vector<8x32xf32>
    %cst_17 = arith.constant dense<0.000000e+00> : vector<16x32xf32>
    %77 = tpu.matmul %72, %76, %cst_17 {dimension_numbers = #tpu.dot_dimension_numbers<[1], [0], [0], [1], [0, 0, 1, 1], [], []>} : vector<16x8xf32>, vector<8x32xf32>, vector<16x32xf32> -> vector<16x32xf32>
    %78 = arith.addf %75, %77 : vector<16x32xf32>
    %c1 = arith.constant 1 : index
    %c0_18 = arith.constant 0 : index
    %79 = vector.load %arg5[%c1, %c0_18] : memref<6x32xf32, #tpu.memory_space<vmem>>, vector<1x32xf32>
    %80 = vector.broadcast %79 : vector<1x32xf32> to vector<16x32xf32>
    %81 = arith.addf %78, %80 : vector<16x32xf32>
    %82 = arith.addf %71, %81 : vector<16x32xf32>
    %83 = arith.mulf %82, %12 : vector<16x32xf32>
    %cst_19 = arith.constant dense<0.000000e+00> : vector<16x32xf32>
    %84 = tpu.matmul %59, %83, %cst_19 {dimension_numbers = #tpu.dot_dimension_numbers<[1], [0], [0], [1], [0, 0, 1, 1], [], []>} : vector<16x16xf32>, vector<16x32xf32>, vector<16x32xf32> -> vector<16x32xf32>
    %c56 = arith.constant 56 : index
    %c0_20 = arith.constant 0 : index
    %85 = vector.load %arg4[%c56, %c0_20] : memref<208x32xf32, #tpu.memory_space<vmem>>, vector<32x32xf32>
    %cst_21 = arith.constant dense<0.000000e+00> : vector<16x32xf32>
    %86 = tpu.matmul %84, %85, %cst_21 {dimension_numbers = #tpu.dot_dimension_numbers<[1], [0], [0], [1], [0, 0, 1, 1], [], []>} : vector<16x32xf32>, vector<32x32xf32>, vector<16x32xf32> -> vector<16x32xf32>
    %c88 = arith.constant 88 : index
    %c0_22 = arith.constant 0 : index
    %87 = vector.load %arg4[%c88, %c0_22] : memref<208x32xf32, #tpu.memory_space<vmem>>, vector<8x32xf32>
    %cst_23 = arith.constant dense<0.000000e+00> : vector<16x32xf32>
    %88 = tpu.matmul %72, %87, %cst_23 {dimension_numbers = #tpu.dot_dimension_numbers<[1], [0], [0], [1], [0, 0, 1, 1], [], []>} : vector<16x8xf32>, vector<8x32xf32>, vector<16x32xf32> -> vector<16x32xf32>
    %89 = arith.addf %86, %88 : vector<16x32xf32>
    %c2 = arith.constant 2 : index
    %c0_24 = arith.constant 0 : index
    %90 = vector.load %arg5[%c2, %c0_24] : memref<6x32xf32, #tpu.memory_space<vmem>>, vector<1x32xf32>
    %91 = vector.broadcast %90 : vector<1x32xf32> to vector<16x32xf32>
    %92 = arith.addf %89, %91 : vector<16x32xf32>
    %93 = arith.addf %83, %92 : vector<16x32xf32>
    %94 = arith.mulf %93, %12 : vector<16x32xf32>
    %cst_25 = arith.constant dense<0.000000e+00> : vector<16x32xf32>
    %95 = tpu.matmul %59, %94, %cst_25 {dimension_numbers = #tpu.dot_dimension_numbers<[1], [0], [0], [1], [0, 0, 1, 1], [], []>} : vector<16x16xf32>, vector<16x32xf32>, vector<16x32xf32> -> vector<16x32xf32>
    %c0_26 = arith.constant 0 : index
    %c0_27 = arith.constant 0 : index
    %96 = memref.load %arg3[%c0_26, %c0_27] : memref<1x4xf32, #tpu.memory_space<smem>>
    %cst_28 = arith.constant 0.000000e+00 : f32
    %97 = vector.broadcast %cst_28 : f32 to vector<16x32xf32>
    %98 = arith.cmpf ogt, %95, %97 : vector<16x32xf32>
    %99 = vector.broadcast %96 : f32 to vector<16x32xf32>
    %100 = arith.mulf %99, %95 : vector<16x32xf32>
    %101 = arith.select %98, %95, %100 : vector<16x32xi1>, vector<16x32xf32>
    %c96 = arith.constant 96 : index
    %c0_29 = arith.constant 0 : index
    %102 = vector.load %arg4[%c96, %c0_29] : memref<208x32xf32, #tpu.memory_space<vmem>>, vector<16x32xf32>
    %cst_30 = arith.constant dense<0.000000e+00> : vector<16x32xf32>
    %103 = tpu.matmul %0, %102, %cst_30 {dimension_numbers = #tpu.dot_dimension_numbers<[1], [0], [0], [1], [0, 0, 1, 1], [], []>} : vector<16x16xf32>, vector<16x32xf32>, vector<16x32xf32> -> vector<16x32xf32>
    %c3 = arith.constant 3 : index
    %c0_31 = arith.constant 0 : index
    %104 = vector.load %arg5[%c3, %c0_31] : memref<6x32xf32, #tpu.memory_space<vmem>>, vector<1x32xf32>
    %105 = vector.broadcast %104 : vector<1x32xf32> to vector<16x32xf32>
    %106 = arith.addf %103, %105 : vector<16x32xf32>
    %c0_32 = arith.constant 0 : index
    %c1_33 = arith.constant 1 : index
    %107 = memref.load %arg3[%c0_32, %c1_33] : memref<1x4xf32, #tpu.memory_space<smem>>
    %cst_34 = arith.constant 0.000000e+00 : f32
    %108 = vector.broadcast %cst_34 : f32 to vector<16x32xf32>
    %109 = arith.cmpf ogt, %106, %108 : vector<16x32xf32>
    %110 = vector.broadcast %107 : f32 to vector<16x32xf32>
    %111 = arith.mulf %110, %106 : vector<16x32xf32>
    %112 = arith.select %109, %106, %111 : vector<16x32xi1>, vector<16x32xf32>
    %c112 = arith.constant 112 : index
    %c0_35 = arith.constant 0 : index
    %113 = vector.load %arg4[%c112, %c0_35] : memref<208x32xf32, #tpu.memory_space<vmem>>, vector<32x32xf32>
    %cst_36 = arith.constant dense<0.000000e+00> : vector<16x32xf32>
    %114 = tpu.matmul %112, %113, %cst_36 {dimension_numbers = #tpu.dot_dimension_numbers<[1], [0], [0], [1], [0, 0, 1, 1], [], []>} : vector<16x32xf32>, vector<32x32xf32>, vector<16x32xf32> -> vector<16x32xf32>
    %c4 = arith.constant 4 : index
    %c0_37 = arith.constant 0 : index
    %115 = vector.load %arg5[%c4, %c0_37] : memref<6x32xf32, #tpu.memory_space<vmem>>, vector<1x32xf32>
    %116 = vector.broadcast %115 : vector<1x32xf32> to vector<16x32xf32>
    %117 = arith.addf %114, %116 : vector<16x32xf32>
    %c0_38 = arith.constant 0 : index
    %c2_39 = arith.constant 2 : index
    %118 = memref.load %arg3[%c0_38, %c2_39] : memref<1x4xf32, #tpu.memory_space<smem>>
    %cst_40 = arith.constant 0.000000e+00 : f32
    %119 = vector.broadcast %cst_40 : f32 to vector<16x32xf32>
    %120 = arith.cmpf ogt, %117, %119 : vector<16x32xf32>
    %121 = vector.broadcast %118 : f32 to vector<16x32xf32>
    %122 = arith.mulf %121, %117 : vector<16x32xf32>
    %123 = arith.select %120, %117, %122 : vector<16x32xi1>, vector<16x32xf32>
    %c144 = arith.constant 144 : index
    %c0_41 = arith.constant 0 : index
    %124 = vector.load %arg4[%c144, %c0_41] : memref<208x32xf32, #tpu.memory_space<vmem>>, vector<32x32xf32>
    %cst_42 = arith.constant dense<0.000000e+00> : vector<16x32xf32>
    %125 = tpu.matmul %123, %124, %cst_42 {dimension_numbers = #tpu.dot_dimension_numbers<[1], [0], [0], [1], [0, 0, 1, 1], [], []>} : vector<16x32xf32>, vector<32x32xf32>, vector<16x32xf32> -> vector<16x32xf32>
    %c176 = arith.constant 176 : index
    %c0_43 = arith.constant 0 : index
    %126 = vector.load %arg4[%c176, %c0_43] : memref<208x32xf32, #tpu.memory_space<vmem>>, vector<32x32xf32>
    %cst_44 = arith.constant dense<0.000000e+00> : vector<16x32xf32>
    %127 = tpu.matmul %101, %126, %cst_44 {dimension_numbers = #tpu.dot_dimension_numbers<[1], [0], [0], [1], [0, 0, 1, 1], [], []>} : vector<16x32xf32>, vector<32x32xf32>, vector<16x32xf32> -> vector<16x32xf32>
    %128 = arith.addf %125, %127 : vector<16x32xf32>
    %c5 = arith.constant 5 : index
    %c0_45 = arith.constant 0 : index
    %129 = vector.load %arg5[%c5, %c0_45] : memref<6x32xf32, #tpu.memory_space<vmem>>, vector<1x32xf32>
    %130 = vector.broadcast %129 : vector<1x32xf32> to vector<16x32xf32>
    %131 = arith.addf %128, %130 : vector<16x32xf32>
    %c0_46 = arith.constant 0 : index
    %c3_47 = arith.constant 3 : index
    %132 = memref.load %arg3[%c0_46, %c3_47] : memref<1x4xf32, #tpu.memory_space<smem>>
    %cst_48 = arith.constant 0.000000e+00 : f32
    %133 = vector.broadcast %cst_48 : f32 to vector<16x32xf32>
    %134 = arith.cmpf ogt, %131, %133 : vector<16x32xf32>
    %135 = vector.broadcast %132 : f32 to vector<16x32xf32>
    %136 = arith.mulf %135, %131 : vector<16x32xf32>
    %137 = arith.select %134, %131, %136 : vector<16x32xi1>, vector<16x32xf32>
    %c0_49 = arith.constant 0 : index
    %c0_50 = arith.constant 0 : index
    %138 = vector.load %arg6[%c0_49, %c0_50] : memref<16x32xf32, #tpu.memory_space<vmem>>, vector<16x32xf32>
    tpu.vector_store %arg6[%c0_49, %c0_50], %137 {strides = array<i32>} : memref<16x32xf32, #tpu.memory_space<vmem>>, vector<16x32xf32>,
    return
  }
}

</mosaic_0001>

<llo_original>
// kernel: mpn_forward.1
$region0: #{mpn_forward.1}
  #allocation0 [shape = 'u32[]', space=smem, size = 0x4, offset = 0x4, fixed_abs, tag = 'smem constant byte address 0x4 - core index']
  #allocation1 [shape = 'u32[144,128]{1,0:T(1,128)}', space=vmem, size = 0x12000, scoped, tag = 'internal scratch']
  %s0 = inlined_call_operand.vmem [shape: f32[16,16], index: 0, kind: input, shape index: {}]
  %s1 = inlined_call_operand.vmem [shape: f32[24,8], index: 1, kind: input, shape index: {}]
  %s2 = inlined_call_operand.vmem [shape: s32[16,8], index: 2, kind: input, shape index: {}]
  %s3 = inlined_call_operand.vmem [shape: f32[1,4], index: 3, kind: input, shape index: {}]
  %s4 = inlined_call_operand.vmem [shape: f32[208,32], index: 4, kind: input, shape index: {}]
  %s5 = inlined_call_operand.vmem [shape: f32[6,32], index: 5, kind: input, shape index: {}]
  %s6 = inlined_call_operand.hbm [shape: f32[16,32], index: 6, kind: output, shape index: {}]
  %s7 = sld [smem:[#allocation0]]
  $region38: #{mpn_forward.1} parent=0
    _
  %s9 = ssub.s32 1, %s7
  %s10 = scalar_select 0, %s9, %s7
  $region1: #{mpn_forward.1} parent=0
    #allocation2 [shape = 'u8[512]{0}', space=smem, size = 0x200, scoped, tag = 'input window, operand 3, single buffered']
    #allocation3 [shape = 's32[1]{0}', space=sflag, size = 0x4, scoped, tag = 'scoped memory for mpn_forward.1']
    #allocation4 [shape = 's32[1]{0}', space=sflag, size = 0x4, scoped, tag = 'scoped memory for mpn_forward.1']
    #allocation5 [shape = 'u8[8192]{0}', space=vmem, size = 0x2000, scoped, tag = 'output window, operand 0, single buffered']
    %11 = vsyncpa [#allocation4], 0
    %12 = vsyncpa [#allocation3], 0
    // Predicated region
    $region2: #{mpn_forward.1} parent=1 // pred_check
      _
    $region3: #{mpn_forward.1} parent=1 // pred_check_branch
      %14 = sbr.rel (0) target = $region5
    $region4: #{mpn_forward.1} parent=1 // pred_region
      _
    $region5: #{mpn_forward.1} parent=1 // pred_fallthru
      _
    // Predicated region
    $region6: #{mpn_forward.1} parent=1 // pred_check
      _
    $region7: #{mpn_forward.1} parent=1 // pred_check_branch
      %16 = sbr.rel (0) target = $region9
    $region8: #{mpn_forward.1} parent=1 // pred_region
      _
    $region9: #{mpn_forward.1} parent=1 // pred_fallthru
      _
    // Predicated region
    $region10: #{mpn_forward.1} parent=1 // pred_check
      _
    $region11: #{mpn_forward.1} parent=1 // pred_check_branch
      %18 = sbr.rel (0) target = $region13
    $region12: #{mpn_forward.1} parent=1 // pred_region
      _
    $region13: #{mpn_forward.1} parent=1 // pred_fallthru
      _
    // Predicated region
    $region14: #{mpn_forward.1} parent=1 // pred_check
      _
    $region15: #{mpn_forward.1} parent=1 // pred_check_branch
      %20 = sbr.rel (0) target = $region17
    $region16: #{mpn_forward.1} parent=1 // pred_region
      %s22 = ssub.s32 16, 16
      %23 = vsyncadd [#allocation4], %s22
      %s25 = sshll.u32 %s3, 4
      %s26 = int_to_ptr.vmem [resolvable:$true] %s25
      %28 = dma.vmem_to_smem %s26, 16, [#allocation2], [#allocation4]
    $region17: #{mpn_forward.1} parent=1 // pred_fallthru
      _
    // Predicated region
    $region18: #{mpn_forward.1} parent=1 // pred_check
      _
    $region19: #{mpn_forward.1} parent=1 // pred_check_branch
      %30 = sbr.rel (0) target = $region21
    $region20: #{mpn_forward.1} parent=1 // pred_region
      _
    $region21: #{mpn_forward.1} parent=1 // pred_fallthru
      _
    // Predicated region
    $region22: #{mpn_forward.1} parent=1 // pred_check
      _
    $region23: #{mpn_forward.1} parent=1 // pred_check_branch
      %32 = sbr.rel (0) target = $region25
    $region24: #{mpn_forward.1} parent=1 // pred_region
      _
    $region25: #{mpn_forward.1} parent=1 // pred_fallthru
      _
    // Predicated region
    $region26: #{mpn_forward.1} parent=1 // pred_check
      _
    $region27: #{mpn_forward.1} parent=1 // pred_check_branch
      %34 = sbr.rel (0) target = $region29
    $region28: #{mpn_forward.1} parent=1 // pred_region
      %35 = dma.done [#allocation4], 16
    $region29: #{mpn_forward.1} parent=1 // pred_fallthru
      _
    %36 = sfence
    %v37 = vld [vmem:[%s0] sm:$0xff]
    %v38 = vld [vmem:[%s0 + $0x8] sm:$0xff]
    %v39 = vlaneseq
    %v40 = vshrl.u32 %v39, 7
    %v41 = vadd.s32 %v40, 8
    %v42 = vadd.s32 %v40, 16
    %vm43 = vcmp.ne.s32.totalorder %v40, 0
    %vm44 = vcmp.ne.s32.totalorder %v41, 0
    %vm45 = vcmp.ne.s32.totalorder %v42, 0
    %v46 = vsel %vm43, 1, 0
    %v47 = vsel %vm44, 1, 0
    %v48 = vsel %vm45, 1, 0
    %v49 = vcvt.s32.f32 %v46
    %v50 = vcvt.s32.f32 %v47
    %v51 = vcvt.s32.f32 %v48
    %v52 = vld [vmem:[%s1] sm:$0xff]
    %v53 = vld [vmem:[%s1 + $0x8] sm:$0xff]
    %v54 = vld [vmem:[%s1 + $0x10] sm:$0xff]
    %v55 = vmul.f32 %v52, %v49
    %v56 = vmul.f32 %v53, %v50
    %v57 = vmul.f32 %v54, %v51
    %v58 = vld [vmem:[%s2] sm:$0xff]
    %v59 = vld [vmem:[%s2 + $0x8] sm:$0xff]
    %v60 = vlaneseq
    %v61 = vand.u32 %v60, 127
    %62 = vset.pattern.permute.xlu0 0
    %63 = vperm.xlu0 %62, %v58
    %v64 = vpop.permute.xlu0 %63
    %65 = vset.pattern.permute.xlu0 0
    %66 = vperm.xlu0 %65, %v59
    %v67 = vpop.permute.xlu0 %66
    %vm68 = vcmp.eq.s32.totalorder %v64, %v61
    %vm69 = vcmp.eq.s32.totalorder %v67, %v61
    %v70 = vsel %vm68, 1, 0
    %v71 = vsel %vm69, 1, 0
    %v72 = vcvt.s32.f32 %v70
    %v73 = vcvt.s32.f32 %v71
    %v74 = vadd.f32 %v72, 0.0
    %v75 = vadd.f32 %v73, 0.0
    %76 = vset.pattern.permute.xlu0 4
    %77 = vperm.xlu0 %76, %v58
    %v78 = vpop.permute.xlu0 %77
    %79 = vset.pattern.permute.xlu0 4
    %80 = vperm.xlu0 %79, %v59
    %v81 = vpop.permute.xlu0 %80
    %vm82 = vcmp.eq.s32.totalorder %v78, %v61
    %vm83 = vcmp.eq.s32.totalorder %v81, %v61
    %v84 = vsel %vm82, 1, 0
    %v85 = vsel %vm83, 1, 0
    %v86 = vcvt.s32.f32 %v84
    %v87 = vcvt.s32.f32 %v85
    %v88 = vadd.f32 %v86, 0.0
    %v89 = vadd.f32 %v87, 0.0
    %90 = vset.pattern.permute.xlu0 1
    %91 = vperm.xlu0 %90, %v58
    %v92 = vpop.permute.xlu0 %91
    %93 = vset.pattern.permute.xlu0 1
    %94 = vperm.xlu0 %93, %v59
    %v95 = vpop.permute.xlu0 %94
    %vm96 = vcmp.eq.s32.totalorder %v92, %v61
    %vm97 = vcmp.eq.s32.totalorder %v95, %v61
    %v98 = vsel %vm96, 1, 0
    %v99 = vsel %vm97, 1, 0
    %v100 = vcvt.s32.f32 %v98
    %v101 = vcvt.s32.f32 %v99
    %v102 = vadd.f32 %v74, %v100
    %v103 = vadd.f32 %v75, %v101
    %104 = vset.pattern.permute.xlu0 5
    %105 = vperm.xlu0 %104, %v58
    %v106 = vpop.permute.xlu0 %105
    %107 = vset.pattern.permute.xlu0 5
    %108 = vperm.xlu0 %107, %v59
    %v109 = vpop.permute.xlu0 %108
    %vm110 = vcmp.eq.s32.totalorder %v106, %v61
    %vm111 = vcmp.eq.s32.totalorder %v109, %v61
    %v112 = vsel %vm110, 1, 0
    %v113 = vsel %vm111, 1, 0
    %v114 = vcvt.s32.f32 %v112
    %v115 = vcvt.s32.f32 %v113
    %v116 = vadd.f32 %v88, %v114
    %v117 = vadd.f32 %v89, %v115
    %118 = vset.pattern.permute.xlu0 2
    %119 = vperm.xlu0 %118, %v58
    %v120 = vpop.permute.xlu0 %119
    %121 = vset.pattern.permute.xlu0 2
    %122 = vperm.xlu0 %121, %v59
    %v123 = vpop.permute.xlu0 %122
    %vm124 = vcmp.eq.s32.totalorder %v120, %v61
    %vm125 = vcmp.eq.s32.totalorder %v123, %v61
    %v126 = vsel %vm124, 1, 0
    %v127 = vsel %vm125, 1, 0
    %v128 = vcvt.s32.f32 %v126
    %v129 = vcvt.s32.f32 %v127
    %v130 = vadd.f32 %v102, %v128
    %v131 = vadd.f32 %v103, %v129
    %132 = vset.pattern.permute.xlu0 6
    %133 = vperm.xlu0 %132, %v58
    %v134 = vpop.permute.xlu0 %133
    %135 = vset.pattern.permute.xlu0 6
    %136 = vperm.xlu0 %135, %v59
    %v137 = vpop.permute.xlu0 %136
    %vm138 = vcmp.eq.s32.totalorder %v134, %v61
    %vm139 = vcmp.eq.s32.totalorder %v137, %v61
    %v140 = vsel %vm138, 1, 0
    %v141 = vsel %vm139, 1, 0
    %v142 = vcvt.s32.f32 %v140
    %v143 = vcvt.s32.f32 %v141
    %v144 = vadd.f32 %v116, %v142
    %v145 = vadd.f32 %v117, %v143
    %146 = vset.pattern.permute.xlu0 3
    %147 = vperm.xlu0 %146, %v58
    %v148 = vpop.permute.xlu0 %147
    %149 = vset.pattern.permute.xlu0 3
    %150 = vperm.xlu0 %149, %v59
    %v151 = vpop.permute.xlu0 %150
    %vm152 = vcmp.eq.s32.totalorder %v148, %v61
    %vm153 = vcmp.eq.s32.totalorder %v151, %v61
    %v154 = vsel %vm152, 1, 0
    %v155 = vsel %vm153, 1, 0
    %v156 = vcvt.s32.f32 %v154
    %v157 = vcvt.s32.f32 %v155
    %v158 = vadd.f32 %v130, %v156
    %v159 = vadd.f32 %v131, %v157
    %160 = vset.pattern.permute.xlu0 7
    %161 = vperm.xlu0 %160, %v58
    %v162 = vpop.permute.xlu0 %161
    %163 = vset.pattern.permute.xlu0 7
    %164 = vperm.xlu0 %163, %v59
    %v165 = vpop.permute.xlu0 %164
    %vm166 = vcmp.eq.s32.totalorder %v162, %v61
    %vm167 = vcmp.eq.s32.totalorder %v165, %v61
    %v168 = vsel %vm166, 1, 0
    %v169 = vsel %vm167, 1, 0
    %v170 = vcvt.s32.f32 %v168
    %v171 = vcvt.s32.f32 %v169
    %v172 = vadd.f32 %v144, %v170
    %v173 = vadd.f32 %v145, %v171
    %v174 = vld [vmem:[%s4] sm:$0xff]
    %v175 = vld [vmem:[%s4 + $0x8] sm:$0xff]
    %v176 = vld [vmem:[%s5] sm:$0x1]
    %v177 = vlaneseq
    %v178 = vshrl.u32 %v177, 7
    %v179 = vsub.s32 0, %v178
    %v180 = vrot.slane %v176, %v179
    %vm181 = vcmask 130048
    %v183 = vsel %vm181, %v37, 0
    %v186 = vsel %vm181, %v38, 0
    %188 = vmatprep.subr.mxu0 0.0
    %189 = vmatpush1.msra.mxu0 %v174
    %190 = vmatprep.subr.mxu0 0.0
    %191 = vmatpush1.msra.mxu0 %v175
    %192 = vmatprep.subr.mxu0 0.0
    %193 = vmatpush1.msra.mxu0 0.0
    %194 = vmatprep.subr.mxu0 0.0
    %195 = vmatpush1.msra.mxu0 0.0
    %196 = vmatprep.subr.mxu0 0.0
    %197 = vmatpush1.msra.mxu0 0.0
    %198 = vmatprep.subr.mxu0 0.0
    %199 = vmatpush1.msra.mxu0 0.0
    %200 = vmatprep.subr.mxu0 0.0
    %201 = vmatpush1.msra.mxu0 0.0
    %202 = vmatprep.subr.mxu0 0.0
    %203 = vmatpush1.msra.mxu0 0.0
    %204 = vmatprep.subr.mxu0 0.0
    %205 = vmatpush1.msra.mxu0 0.0
    %206 = vmatprep.subr.mxu0 0.0
    %207 = vmatpush1.msra.mxu0 0.0
    %208 = vmatprep.subr.mxu0 0.0
    %209 = vmatpush1.msra.mxu0 0.0
    %210 = vmatprep.subr.mxu0 0.0
    %211 = vmatpush1.msra.mxu0 0.0
    %212 = vmatprep.subr.mxu0 0.0
    %213 = vmatpush1.msra.mxu0 0.0
    %214 = vmatprep.subr.mxu0 0.0
    %215 = vmatpush1.msra.mxu0 0.0
    %216 = vmatprep.subr.mxu0 0.0
    %217 = vmatpush1.msra.mxu0 0.0
    %218 = vmatprep.subr.mxu0 0.0
    %219 = vmatpush1.msra.mxu0 0.0
    %220 = vmatprep.subr.mxu0 0.0
    %221 = vmatpush1.msra.mxu0 0.0
    %222 = vmatprep.subr.mxu0 0.0
    %223 = vmatpush1.msra.mxu0 0.0
    %224 = vmatprep.subr.mxu0 0.0
    %225 = vmatpush1.msra.mxu0 0.0
    %226 = vmatprep.subr.mxu0 0.0
    %227 = vmatpush1.msra.mxu0 0.0
    %228 = vmatprep.subr.mxu0 0.0
    %229 = vmatpush1.msra.mxu0 0.0
    %230 = vmatprep.subr.mxu0 0.0
    %231 = vmatpush1.msra.mxu0 0.0
    %232 = vmatprep.subr.mxu0 0.0
    %233 = vmatpush1.msra.mxu0 0.0
    %234 = vmatprep.subr.mxu0 0.0
    %235 = vmatpush1.msra.mxu0 0.0
    %236 = vmatprep.subr.mxu0 0.0
    %237 = vmatpush1.msra.mxu0 0.0
    %238 = vmatprep.subr.mxu0 0.0
    %239 = vmatpush1.msra.mxu0 0.0
    %240 = vmatprep.subr.mxu0 0.0
    %241 = vmatpush1.msra.mxu0 0.0
    %242 = vmatprep.subr.mxu0 0.0
    %243 = vmatpush1.msra.mxu0 0.0
    %244 = vmatprep.subr.mxu0 0.0
    %245 = vmatpush1.msra.mxu0 0.0
    %246 = vmatprep.subr.mxu0 0.0
    %247 = vmatpush1.msra.mxu0 0.0
    %248 = vmatprep.subr.mxu0 0.0
    %249 = vmatpush1.msra.mxu0 0.0
    %250 = vmatprep.subr.mxu0 0.0
    %251 = vmatpush1.msra.mxu0 0.0
    %252 = vmatprep.mubr.f32.mxu0 0.0
    %253 = vmatmul.mubr.f32.gmra.mrb[0].mxu0 %v183
    %v254 = vpop.f32.mrb[0].mxu0
    %v255 = vadd.f32 %v180, %v254
    %v256 = vpop.f32.mrb[0].mxu0
    %257 = vmatprep.mubr.f32.mxu0 0.0
    %258 = vmatmul.mubr.f32.gmra.mrb[0].mxu0 %v186
    %v259 = vpop.f32.mrb[0].mxu0
    %v260 = vadd.f32 %v180, %v259
    %v261 = vpop.f32.mrb[0].mxu0
    %262 = vdwg.mxu0
    %v263 = vmul.f32 %v255, %v49
    %v264 = vmul.f32 %v260, %v50
    %vm265 = vcmask 195584
    %v267 = vsel %vm265, %v172, 0
    %v270 = vsel %vm265, %v173, 0
    %272 = vmatprep.subr.mxu0 0.0
    %273 = vmatpush1.msra.mxu0 %v55
    %274 = vmatprep.subr.mxu0 0.0
    %275 = vmatpush1.msra.mxu0 %v56
    %276 = vmatprep.subr.mxu0 0.0
    %277 = vmatpush1.msra.mxu0 %v57
    %278 = vmatprep.subr.mxu0 0.0
    %279 = vmatpush1.msra.mxu0 0.0
    %280 = vmatprep.subr.mxu0 0.0
    %281 = vmatpush1.msra.mxu0 0.0
    %282 = vmatprep.subr.mxu0 0.0
    %283 = vmatpush1.msra.mxu0 0.0
    %284 = vmatprep.subr.mxu0 0.0
    %285 = vmatpush1.msra.mxu0 0.0
    %286 = vmatprep.subr.mxu0 0.0
    %287 = vmatpush1.msra.mxu0 0.0
    %288 = vmatprep.subr.mxu0 0.0
    %289 = vmatpush1.msra.mxu0 0.0
    %290 = vmatprep.subr.mxu0 0.0
    %291 = vmatpush1.msra.mxu0 0.0
    %292 = vmatprep.subr.mxu0 0.0
    %293 = vmatpush1.msra.mxu0 0.0
    %294 = vmatprep.subr.mxu0 0.0
    %295 = vmatpush1.msra.mxu0 0.0
    %296 = vmatprep.subr.mxu0 0.0
    %297 = vmatpush1.msra.mxu0 0.0
    %298 = vmatprep.subr.mxu0 0.0
    %299 = vmatpush1.msra.mxu0 0.0
    %300 = vmatprep.subr.mxu0 0.0
    %301 = vmatpush1.msra.mxu0 0.0
    %302 = vmatprep.subr.mxu0 0.0
    %303 = vmatpush1.msra.mxu0 0.0
    %304 = vmatprep.subr.mxu0 0.0
    %305 = vmatpush1.msra.mxu0 0.0
    %306 = vmatprep.subr.mxu0 0.0
    %307 = vmatpush1.msra.mxu0 0.0
    %308 = vmatprep.subr.mxu0 0.0
    %309 = vmatpush1.msra.mxu0 0.0
    %310 = vmatprep.subr.mxu0 0.0
    %311 = vmatpush1.msra.mxu0 0.0
    %312 = vmatprep.subr.mxu0 0.0
    %313 = vmatpush1.msra.mxu0 0.0
    %314 = vmatprep.subr.mxu0 0.0
    %315 = vmatpush1.msra.mxu0 0.0
    %316 = vmatprep.subr.mxu0 0.0
    %317 = vmatpush1.msra.mxu0 0.0
    %318 = vmatprep.subr.mxu0 0.0
    %319 = vmatpush1.msra.mxu0 0.0
    %320 = vmatprep.subr.mxu0 0.0
    %321 = vmatpush1.msra.mxu0 0.0
    %322 = vmatprep.subr.mxu0 0.0
    %323 = vmatpush1.msra.mxu0 0.0
    %324 = vmatprep.subr.mxu0 0.0
    %325 = vmatpush1.msra.mxu0 0.0
    %326 = vmatprep.subr.mxu0 0.0
    %327 = vmatpush1.msra.mxu0 0.0
    %328 = vmatprep.subr.mxu0 0.0
    %329 = vmatpush1.msra.mxu0 0.0
    %330 = vmatprep.subr.mxu0 0.0
    %331 = vmatpush1.msra.mxu0 0.0
    %332 = vmatprep.subr.mxu0 0.0
    %333 = vmatpush1.msra.mxu0 0.0
    %334 = vmatprep.subr.mxu0 0.0
    %335 = vmatpush1.msra.mxu0 0.0
    %336 = vmatprep.mubr.f32.mxu0 0.0
    %337 = vmatmul.mubr.f32.gmra.mrb[0].mxu0 %v267
    %v338 = vpop.f32.mrb[0].mxu0
    %v339 = vadd.f32 0.0, %v338
    %v340 = vpop.f32.mrb[0].mxu0
    %341 = vmatprep.mubr.f32.mxu0 0.0
    %342 = vmatmul.mubr.f32.gmra.mrb[0].mxu0 %v270
    %v343 = vpop.f32.mrb[0].mxu0
    %v344 = vadd.f32 0.0, %v343
    %v345 = vpop.f32.mrb[0].mxu0
    %346 = vdwg.mxu0
    %v348 = vsel %vm181, %v158, 0
    %v351 = vsel %vm181, %v159, 0
    %353 = vmatprep.subr.mxu0 0.0
    %354 = vmatpush1.msra.mxu0 %v263
    %355 = vmatprep.subr.mxu0 0.0
    %356 = vmatpush1.msra.mxu0 %v264
    %357 = vmatprep.subr.mxu0 0.0
    %358 = vmatpush1.msra.mxu0 0.0
    %359 = vmatprep.subr.mxu0 0.0
    %360 = vmatpush1.msra.mxu0 0.0
    %361 = vmatprep.subr.mxu0 0.0
    %362 = vmatpush1.msra.mxu0 0.0
    %363 = vmatprep.subr.mxu0 0.0
    %364 = vmatpush1.msra.mxu0 0.0
    %365 = vmatprep.subr.mxu0 0.0
    %366 = vmatpush1.msra.mxu0 0.0
    %367 = vmatprep.subr.mxu0 0.0
    %368 = vmatpush1.msra.mxu0 0.0
    %369 = vmatprep.subr.mxu0 0.0
    %370 = vmatpush1.msra.mxu0 0.0
    %371 = vmatprep.subr.mxu0 0.0
    %372 = vmatpush1.msra.mxu0 0.0
    %373 = vmatprep.subr.mxu0 0.0
    %374 = vmatpush1.msra.mxu0 0.0
    %375 = vmatprep.subr.mxu0 0.0
    %376 = vmatpush1.msra.mxu0 0.0
    %377 = vmatprep.subr.mxu0 0.0
    %378 = vmatpush1.msra.mxu0 0.0
    %379 = vmatprep.subr.mxu0 0.0
    %380 = vmatpush1.msra.mxu0 0.0
    %381 = vmatprep.subr.mxu0 0.0
    %382 = vmatpush1.msra.mxu0 0.0
    %383 = vmatprep.subr.mxu0 0.0
    %384 = vmatpush1.msra.mxu0 0.0
    %385 = vmatprep.subr.mxu0 0.0
    %386 = vmatpush1.msra.mxu0 0.0
    %387 = vmatprep.subr.mxu0 0.0
    %388 = vmatpush1.msra.mxu0 0.0
    %389 = vmatprep.subr.mxu0 0.0
    %390 = vmatpush1.msra.mxu0 0.0
    %391 = vmatprep.subr.mxu0 0.0
    %392 = vmatpush1.msra.mxu0 0.0
    %393 = vmatprep.subr.mxu0 0.0
    %394 = vmatpush1.msra.mxu0 0.0
    %395 = vmatprep.subr.mxu0 0.0
    %396 = vmatpush1.msra.mxu0 0.0
    %397 = vmatprep.subr.mxu0 0.0
    %398 = vmatpush1.msra.mxu0 0.0
    %399 = vmatprep.subr.mxu0 0.0
    %400 = vmatpush1.msra.mxu0 0.0
    %401 = vmatprep.subr.mxu0 0.0
    %402 = vmatpush1.msra.mxu0 0.0
    %403 = vmatprep.subr.mxu0 0.0
    %404 = vmatpush1.msra.mxu0 0.0
    %405 = vmatprep.subr.mxu0 0.0
    %406 = vmatpush1.msra.mxu0 0.0
    %407 = vmatprep.subr.mxu0 0.0
    %408 = vmatpush1.msra.mxu0 0.0
    %409 = vmatprep.subr.mxu0 0.0
    %410 = vmatpush1.msra.mxu0 0.0
    %411 = vmatprep.subr.mxu0 0.0
    %412 = vmatpush1.msra.mxu0 0.0
    %413 = vmatprep.subr.mxu0 0.0
    %414 = vmatpush1.msra.mxu0 0.0
    %415 = vmatprep.subr.mxu0 0.0
    %416 = vmatpush1.msra.mxu0 0.0
    %417 = vmatprep.mubr.f32.mxu0 0.0
    %418 = vmatmul.mubr.f32.gmra.mrb[0].mxu0 %v348
    %v419 = vpop.f32.mrb[0].mxu0
    %v420 = vadd.f32 0.0, %v419
    %v421 = vpop.f32.mrb[0].mxu0
    %422 = vmatprep.mubr.f32.mxu0 0.0
    %423 = vmatmul.mubr.f32.gmra.mrb[0].mxu0 %v351
    %v424 = vpop.f32.mrb[0].mxu0
    %v425 = vadd.f32 0.0, %v424
    %v426 = vpop.f32.mrb[0].mxu0
    %427 = vdwg.mxu0
    %v428 = vld [vmem:[%s4 + $0x10] sm:$0xff]
    %v429 = vld [vmem:[%s4 + $0x18] sm:$0xff]
    %v430 = vld [vmem:[%s4 + $0x20] sm:$0xff]
    %v431 = vld [vmem:[%s4 + $0x28] sm:$0xff]
    %v432 = vld [vmem:[%s4 + $0x30] sm:$0xff]
    %vm433 = vcmask 64512
    %v435 = vsel %vm433, %v339, 0
    %v438 = vsel %vm433, %v344, 0
    %440 = vmatprep.subr.mxu0 0.0
    %441 = vmatpush1.msra.mxu0 %v432
    %442 = vmatprep.subr.mxu0 0.0
    %443 = vmatpush1.msra.mxu0 0.0
    %444 = vmatprep.subr.mxu0 0.0
    %445 = vmatpush1.msra.mxu0 0.0
    %446 = vmatprep.subr.mxu0 0.0
    %447 = vmatpush1.msra.mxu0 0.0
    %448 = vmatprep.subr.mxu0 0.0
    %449 = vmatpush1.msra.mxu0 0.0
    %450 = vmatprep.subr.mxu0 0.0
    %451 = vmatpush1.msra.mxu0 0.0
    %452 = vmatprep.subr.mxu0 0.0
    %453 = vmatpush1.msra.mxu0 0.0
    %454 = vmatprep.subr.mxu0 0.0
    %455 = vmatpush1.msra.mxu0 0.0
    %456 = vmatprep.subr.mxu0 0.0
    %457 = vmatpush1.msra.mxu0 0.0
    %458 = vmatprep.subr.mxu0 0.0
    %459 = vmatpush1.msra.mxu0 0.0
    %460 = vmatprep.subr.mxu0 0.0
    %461 = vmatpush1.msra.mxu0 0.0
    %462 = vmatprep.subr.mxu0 0.0
    %463 = vmatpush1.msra.mxu0 0.0
    %464 = vmatprep.subr.mxu0 0.0
    %465 = vmatpush1.msra.mxu0 0.0
    %466 = vmatprep.subr.mxu0 0.0
    %467 = vmatpush1.msra.mxu0 0.0
    %468 = vmatprep.subr.mxu0 0.0
    %469 = vmatpush1.msra.mxu0 0.0
    %470 = vmatprep.subr.mxu0 0.0
    %471 = vmatpush1.msra.mxu0 0.0
    %472 = vmatprep.subr.mxu0 0.0
    %473 = vmatpush1.msra.mxu0 0.0
    %474 = vmatprep.subr.mxu0 0.0
    %475 = vmatpush1.msra.mxu0 0.0
    %476 = vmatprep.subr.mxu0 0.0
    %477 = vmatpush1.msra.mxu0 0.0
    %478 = vmatprep.subr.mxu0 0.0
    %479 = vmatpush1.msra.mxu0 0.0
    %480 = vmatprep.subr.mxu0 0.0
    %481 = vmatpush1.msra.mxu0 0.0
    %482 = vmatprep.subr.mxu0 0.0
    %483 = vmatpush1.msra.mxu0 0.0
    %484 = vmatprep.subr.mxu0 0.0
    %485 = vmatpush1.msra.mxu0 0.0
    %486 = vmatprep.subr.mxu0 0.0
    %487 = vmatpush1.msra.mxu0 0.0
    %488 = vmatprep.subr.mxu0 0.0
    %489 = vmatpush1.msra.mxu0 0.0
    %490 = vmatprep.subr.mxu0 0.0
    %491 = vmatpush1.msra.mxu0 0.0
    %492 = vmatprep.subr.mxu0 0.0
    %493 = vmatpush1.msra.mxu0 0.0
    %494 = vmatprep.subr.mxu0 0.0
    %495 = vmatpush1.msra.mxu0 0.0
    %496 = vmatprep.subr.mxu0 0.0
    %497 = vmatpush1.msra.mxu0 0.0
    %498 = vmatprep.subr.mxu0 0.0
    %499 = vmatpush1.msra.mxu0 0.0
    %500 = vmatprep.subr.mxu0 0.0
    %501 = vmatpush1.msra.mxu0 0.0
    %502 = vmatprep.subr.mxu0 0.0
    %503 = vmatpush1.msra.mxu0 0.0
    %504 = vmatprep.mubr.f32.mxu0 0.0
    %505 = vmatmul.mubr.f32.gmra.mrb[0].mxu0 %v435
    %v506 = vpop.f32.mrb[0].mxu0
    %v507 = vadd.f32 0.0, %v506
    %v508 = vpop.f32.mrb[0].mxu0
    %509 = vmatprep.mubr.f32.mxu0 0.0
    %510 = vmatmul.mubr.f32.gmra.mrb[0].mxu0 %v438
    %v511 = vpop.f32.mrb[0].mxu0
    %v512 = vadd.f32 0.0, %v511
    %v513 = vpop.f32.mrb[0].mxu0
    %514 = vdwg.mxu0
    %vm515 = vcmask 261120
    %v517 = vsel %vm515, %v420, 0
    %v520 = vsel %vm515, %v425, 0
    %522 = vmatprep.subr.mxu0 0.0
    %523 = vmatpush1.msra.mxu0 %v428
    %524 = vmatprep.subr.mxu0 0.0
    %525 = vmatpush1.msra.mxu0 %v429
    %526 = vmatprep.subr.mxu0 0.0
    %527 = vmatpush1.msra.mxu0 %v430
    %528 = vmatprep.subr.mxu0 0.0
    %529 = vmatpush1.msra.mxu0 %v431
    %530 = vmatprep.subr.mxu0 0.0
    %531 = vmatpush1.msra.mxu0 0.0
    %532 = vmatprep.subr.mxu0 0.0
    %533 = vmatpush1.msra.mxu0 0.0
    %534 = vmatprep.subr.mxu0 0.0
    %535 = vmatpush1.msra.mxu0 0.0
    %536 = vmatprep.subr.mxu0 0.0
    %537 = vmatpush1.msra.mxu0 0.0
    %538 = vmatprep.subr.mxu0 0.0
    %539 = vmatpush1.msra.mxu0 0.0
    %540 = vmatprep.subr.mxu0 0.0
    %541 = vmatpush1.msra.mxu0 0.0
    %542 = vmatprep.subr.mxu0 0.0
    %543 = vmatpush1.msra.mxu0 0.0
    %544 = vmatprep.subr.mxu0 0.0
    %545 = vmatpush1.msra.mxu0 0.0
    %546 = vmatprep.subr.mxu0 0.0
    %547 = vmatpush1.msra.mxu0 0.0
    %548 = vmatprep.subr.mxu0 0.0
    %549 = vmatpush1.msra.mxu0 0.0
    %550 = vmatprep.subr.mxu0 0.0
    %551 = vmatpush1.msra.mxu0 0.0
    %552 = vmatprep.subr.mxu0 0.0
    %553 = vmatpush1.msra.mxu0 0.0
    %554 = vmatprep.subr.mxu0 0.0
    %555 = vmatpush1.msra.mxu0 0.0
    %556 = vmatprep.subr.mxu0 0.0
    %557 = vmatpush1.msra.mxu0 0.0
    %558 = vmatprep.subr.mxu0 0.0
    %559 = vmatpush1.msra.mxu0 0.0
    %560 = vmatprep.subr.mxu0 0.0
    %561 = vmatpush1.msra.mxu0 0.0
    %562 = vmatprep.subr.mxu0 0.0
    %563 = vmatpush1.msra.mxu0 0.0
    %564 = vmatprep.subr.mxu0 0.0
    %565 = vmatpush1.msra.mxu0 0.0
    %566 = vmatprep.subr.mxu0 0.0
    %567 = vmatpush1.msra.mxu0 0.0
    %568 = vmatprep.subr.mxu0 0.0
    %569 = vmatpush1.msra.mxu0 0.0
    %570 = vmatprep.subr.mxu0 0.0
    %571 = vmatpush1.msra.mxu0 0.0
    %572 = vmatprep.subr.mxu0 0.0
    %573 = vmatpush1.msra.mxu0 0.0
    %574 = vmatprep.subr.mxu0 0.0
    %575 = vmatpush1.msra.mxu0 0.0
    %576 = vmatprep.subr.mxu0 0.0
    %577 = vmatpush1.msra.mxu0 0.0
    %578 = vmatprep.subr.mxu0 0.0
    %579 = vmatpush1.msra.mxu0 0.0
    %580 = vmatprep.subr.mxu0 0.0
    %581 = vmatpush1.msra.mxu0 0.0
    %582 = vmatprep.subr.mxu0 0.0
    %583 = vmatpush1.msra.mxu0 0.0
    %584 = vmatprep.subr.mxu0 0.0
    %585 = vmatpush1.msra.mxu0 0.0
    %586 = vmatprep.mubr.f32.mxu0 0.0
    %587 = vmatmul.mubr.f32.gmra.mrb[0].mxu0 %v517
    %v588 = vpop.f32.mrb[0].mxu0
    %v589 = vadd.f32 %v507, %v588
    %v590 = vpop.f32.mrb[0].mxu0
    %591 = vmatprep.mubr.f32.mxu0 0.0
    %592 = vmatmul.mubr.f32.gmra.mrb[0].mxu0 %v520
    %v593 = vpop.f32.mrb[0].mxu0
    %v594 = vadd.f32 %v512, %v593
    %v595 = vpop.f32.mrb[0].mxu0
    %596 = vdwg.mxu0
    %v597 = vld [vmem:[%s5 + $0x1] sm:$0x1]
    %v598 = vlaneseq
    %v599 = vshrl.u32 %v598, 7
    %v600 = vsub.s32 0, %v599
    %v601 = vrot.slane %v597, %v600
    %v602 = vadd.f32 %v589, %v601
    %v603 = vadd.f32 %v594, %v601
    %v604 = vadd.f32 %v263, %v602
    %v605 = vadd.f32 %v264, %v603
    %v606 = vmul.f32 %v604, %v49
    %v607 = vmul.f32 %v605, %v50
    %608 = vmatprep.subr.mxu0 0.0
    %609 = vmatpush1.msra.mxu0 %v606
    %610 = vmatprep.subr.mxu0 0.0
    %611 = vmatpush1.msra.mxu0 %v607
    %612 = vmatprep.subr.mxu0 0.0
    %613 = vmatpush1.msra.mxu0 0.0
    %614 = vmatprep.subr.mxu0 0.0
    %615 = vmatpush1.msra.mxu0 0.0
    %616 = vmatprep.subr.mxu0 0.0
    %617 = vmatpush1.msra.mxu0 0.0
    %618 = vmatprep.subr.mxu0 0.0
    %619 = vmatpush1.msra.mxu0 0.0
    %620 = vmatprep.subr.mxu0 0.0
    %621 = vmatpush1.msra.mxu0 0.0
    %622 = vmatprep.subr.mxu0 0.0
    %623 = vmatpush1.msra.mxu0 0.0
    %624 = vmatprep.subr.mxu0 0.0
    %625 = vmatpush1.msra.mxu0 0.0
    %626 = vmatprep.subr.mxu0 0.0
    %627 = vmatpush1.msra.mxu0 0.0
    %628 = vmatprep.subr.mxu0 0.0
    %629 = vmatpush1.msra.mxu0 0.0
    %630 = vmatprep.subr.mxu0 0.0
    %631 = vmatpush1.msra.mxu0 0.0
    %632 = vmatprep.subr.mxu0 0.0
    %633 = vmatpush1.msra.mxu0 0.0
    %634 = vmatprep.subr.mxu0 0.0
    %635 = vmatpush1.msra.mxu0 0.0
    %636 = vmatprep.subr.mxu0 0.0
    %637 = vmatpush1.msra.mxu0 0.0
    %638 = vmatprep.subr.mxu0 0.0
    %639 = vmatpush1.msra.mxu0 0.0
    %640 = vmatprep.subr.mxu0 0.0
    %641 = vmatpush1.msra.mxu0 0.0
    %642 = vmatprep.subr.mxu0 0.0
    %643 = vmatpush1.msra.mxu0 0.0
    %644 = vmatprep.subr.mxu0 0.0
    %645 = vmatpush1.msra.mxu0 0.0
    %646 = vmatprep.subr.mxu0 0.0
    %647 = vmatpush1.msra.mxu0 0.0
    %648 = vmatprep.subr.mxu0 0.0
    %649 = vmatpush1.msra.mxu0 0.0
    %650 = vmatprep.subr.mxu0 0.0
    %651 = vmatpush1.msra.mxu0 0.0
    %652 = vmatprep.subr.mxu0 0.0
    %653 = vmatpush1.msra.mxu0 0.0
    %654 = vmatprep.subr.mxu0 0.0
    %655 = vmatpush1.msra.mxu0 0.0
    %656 = vmatprep.subr.mxu0 0.0
    %657 = vmatpush1.msra.mxu0 0.0
    %658 = vmatprep.subr.mxu0 0.0
    %659 = vmatpush1.msra.mxu0 0.0
    %660 = vmatprep.subr.mxu0 0.0
    %661 = vmatpush1.msra.mxu0 0.0
    %662 = vmatprep.subr.mxu0 0.0
    %663 = vmatpush1.msra.mxu0 0.0
    %664 = vmatprep.subr.mxu0 0.0
    %665 = vmatpush1.msra.mxu0 0.0
    %666 = vmatprep.subr.mxu0 0.0
    %667 = vmatpush1.msra.mxu0 0.0
    %668 = vmatprep.subr.mxu0 0.0
    %669 = vmatpush1.msra.mxu0 0.0
    %670 = vmatprep.subr.mxu0 0.0
    %671 = vmatpush1.msra.mxu0 0.0
    %672 = vmatprep.mubr.f32.mxu0 0.0
    %673 = vmatmul.mubr.f32.gmra.mrb[0].mxu0 %v348
    %v674 = vpop.f32.mrb[0].mxu0
    %v675 = vadd.f32 0.0, %v674
    %v676 = vpop.f32.mrb[0].mxu0
    %677 = vmatprep.mubr.f32.mxu0 0.0
    %678 = vmatmul.mubr.f32.gmra.mrb[0].mxu0 %v351
    %v679 = vpop.f32.mrb[0].mxu0
    %v680 = vadd.f32 0.0, %v679
    %v681 = vpop.f32.mrb[0].mxu0
    %682 = vdwg.mxu0
    %v683 = vld [vmem:[%s4 + $0x38] sm:$0xff]
    %v684 = vld [vmem:[%s4 + $0x40] sm:$0xff]
    %v685 = vld [vmem:[%s4 + $0x48] sm:$0xff]
    %v686 = vld [vmem:[%s4 + $0x50] sm:$0xff]
    %v687 = vld [vmem:[%s4 + $0x58] sm:$0xff]
    %688 = vmatprep.subr.mxu0 0.0
    %689 = vmatpush1.msra.mxu0 %v687
    %690 = vmatprep.subr.mxu0 0.0
    %691 = vmatpush1.msra.mxu0 0.0
    %692 = vmatprep.subr.mxu0 0.0
    %693 = vmatpush1.msra.mxu0 0.0
    %694 = vmatprep.subr.mxu0 0.0
    %695 = vmatpush1.msra.mxu0 0.0
    %696 = vmatprep.subr.mxu0 0.0
    %697 = vmatpush1.msra.mxu0 0.0
    %698 = vmatprep.subr.mxu0 0.0
    %699 = vmatpush1.msra.mxu0 0.0
    %700 = vmatprep.subr.mxu0 0.0
    %701 = vmatpush1.msra.mxu0 0.0
    %702 = vmatprep.subr.mxu0 0.0
    %703 = vmatpush1.msra.mxu0 0.0
    %704 = vmatprep.subr.mxu0 0.0
    %705 = vmatpush1.msra.mxu0 0.0
    %706 = vmatprep.subr.mxu0 0.0
    %707 = vmatpush1.msra.mxu0 0.0
    %708 = vmatprep.subr.mxu0 0.0
    %709 = vmatpush1.msra.mxu0 0.0
    %710 = vmatprep.subr.mxu0 0.0
    %711 = vmatpush1.msra.mxu0 0.0
    %712 = vmatprep.subr.mxu0 0.0
    %713 = vmatpush1.msra.mxu0 0.0
    %714 = vmatprep.subr.mxu0 0.0
    %715 = vmatpush1.msra.mxu0 0.0
    %716 = vmatprep.subr.mxu0 0.0
    %717 = vmatpush1.msra.mxu0 0.0
    %718 = vmatprep.subr.mxu0 0.0
    %719 = vmatpush1.msra.mxu0 0.0
    %720 = vmatprep.subr.mxu0 0.0
    %721 = vmatpush1.msra.mxu0 0.0
    %722 = vmatprep.subr.mxu0 0.0
    %723 = vmatpush1.msra.mxu0 0.0
    %724 = vmatprep.subr.mxu0 0.0
    %725 = vmatpush1.msra.mxu0 0.0
    %726 = vmatprep.subr.mxu0 0.0
    %727 = vmatpush1.msra.mxu0 0.0
    %728 = vmatprep.subr.mxu0 0.0
    %729 = vmatpush1.msra.mxu0 0.0
    %730 = vmatprep.subr.mxu0 0.0
    %731 = vmatpush1.msra.mxu0 0.0
    %732 = vmatprep.subr.mxu0 0.0
    %733 = vmatpush1.msra.mxu0 0.0
    %734 = vmatprep.subr.mxu0 0.0
    %735 = vmatpush1.msra.mxu0 0.0
    %736 = vmatprep.subr.mxu0 0.0
    %737 = vmatpush1.msra.mxu0 0.0
    %738 = vmatprep.subr.mxu0 0.0
    %739 = vmatpush1.msra.mxu0 0.0
    %740 = vmatprep.subr.mxu0 0.0
    %741 = vmatpush1.msra.mxu0 0.0
    %742 = vmatprep.subr.mxu0 0.0
    %743 = vmatpush1.msra.mxu0 0.0
    %744 = vmatprep.subr.mxu0 0.0
    %745 = vmatpush1.msra.mxu0 0.0
    %746 = vmatprep.subr.mxu0 0.0
    %747 = vmatpush1.msra.mxu0 0.0
    %748 = vmatprep.subr.mxu0 0.0
    %749 = vmatpush1.msra.mxu0 0.0
    %750 = vmatprep.subr.mxu0 0.0
    %751 = vmatpush1.msra.mxu0 0.0
    %752 = vmatprep.mubr.f32.mxu0 0.0
    %753 = vmatmul.mubr.f32.gmra.mrb[0].mxu0 %v435
    %v754 = vpop.f32.mrb[0].mxu0
    %v755 = vadd.f32 0.0, %v754
    %v756 = vpop.f32.mrb[0].mxu0
    %757 = vmatprep.mubr.f32.mxu0 0.0
    %758 = vmatmul.mubr.f32.gmra.mrb[0].mxu0 %v438
    %v759 = vpop.f32.mrb[0].mxu0
    %v760 = vadd.f32 0.0, %v759
    %v761 = vpop.f32.mrb[0].mxu0
    %762 = vdwg.mxu0
    %v764 = vsel %vm515, %v675, 0
    %v767 = vsel %vm515, %v680, 0
    %769 = vmatprep.subr.mxu0 0.0
    %770 = vmatpush1.msra.mxu0 %v683
    %771 = vmatprep.subr.mxu0 0.0
    %772 = vmatpush1.msra.mxu0 %v684
    %773 = vmatprep.subr.mxu0 0.0
    %774 = vmatpush1.msra.mxu0 %v685
    %775 = vmatprep.subr.mxu0 0.0
    %776 = vmatpush1.msra.mxu0 %v686
    %777 = vmatprep.subr.mxu0 0.0
    %778 = vmatpush1.msra.mxu0 0.0
    %779 = vmatprep.subr.mxu0 0.0
    %780 = vmatpush1.msra.mxu0 0.0
    %781 = vmatprep.subr.mxu0 0.0
    %782 = vmatpush1.msra.mxu0 0.0
    %783 = vmatprep.subr.mxu0 0.0
    %784 = vmatpush1.msra.mxu0 0.0
    %785 = vmatprep.subr.mxu0 0.0
    %786 = vmatpush1.msra.mxu0 0.0
    %787 = vmatprep.subr.mxu0 0.0
    %788 = vmatpush1.msra.mxu0 0.0
    %789 = vmatprep.subr.mxu0 0.0
    %790 = vmatpush1.msra.mxu0 0.0
    %791 = vmatprep.subr.mxu0 0.0
    %792 = vmatpush1.msra.mxu0 0.0
    %793 = vmatprep.subr.mxu0 0.0
    %794 = vmatpush1.msra.mxu0 0.0
    %795 = vmatprep.subr.mxu0 0.0
    %796 = vmatpush1.msra.mxu0 0.0
    %797 = vmatprep.subr.mxu0 0.0
    %798 = vmatpush1.msra.mxu0 0.0
    %799 = vmatprep.subr.mxu0 0.0
    %800 = vmatpush1.msra.mxu0 0.0
    %801 = vmatprep.subr.mxu0 0.0
    %802 = vmatpush1.msra.mxu0 0.0
    %803 = vmatprep.subr.mxu0 0.0
    %804 = vmatpush1.msra.mxu0 0.0
    %805 = vmatprep.subr.mxu0 0.0
    %806 = vmatpush1.msra.mxu0 0.0
    %807 = vmatprep.subr.mxu0 0.0
    %808 = vmatpush1.msra.mxu0 0.0
    %809 = vmatprep.subr.mxu0 0.0
    %810 = vmatpush1.msra.mxu0 0.0
    %811 = vmatprep.subr.mxu0 0.0
    %812 = vmatpush1.msra.mxu0 0.0
    %813 = vmatprep.subr.mxu0 0.0
    %814 = vmatpush1.msra.mxu0 0.0
    %815 = vmatprep.subr.mxu0 0.0
    %816 = vmatpush1.msra.mxu0 0.0
    %817 = vmatprep.subr.mxu0 0.0
    %818 = vmatpush1.msra.mxu0 0.0
    %819 = vmatprep.subr.mxu0 0.0
    %820 = vmatpush1.msra.mxu0 0.0
    %821 = vmatprep.subr.mxu0 0.0
    %822 = vmatpush1.msra.mxu0 0.0
    %823 = vmatprep.subr.mxu0 0.0
    %824 = vmatpush1.msra.mxu0 0.0
    %825 = vmatprep.subr.mxu0 0.0
    %826 = vmatpush1.msra.mxu0 0.0
    %827 = vmatprep.subr.mxu0 0.0
    %828 = vmatpush1.msra.mxu0 0.0
    %829 = vmatprep.subr.mxu0 0.0
    %830 = vmatpush1.msra.mxu0 0.0
    %831 = vmatprep.subr.mxu0 0.0
    %832 = vmatpush1.msra.mxu0 0.0
    %833 = vmatprep.mubr.f32.mxu0 0.0
    %834 = vmatmul.mubr.f32.gmra.mrb[0].mxu0 %v764
    %v835 = vpop.f32.mrb[0].mxu0
    %v836 = vadd.f32 %v755, %v835
    %v837 = vpop.f32.mrb[0].mxu0
    %838 = vmatprep.mubr.f32.mxu0 0.0
    %839 = vmatmul.mubr.f32.gmra.mrb[0].mxu0 %v767
    %v840 = vpop.f32.mrb[0].mxu0
    %v841 = vadd.f32 %v760, %v840
    %v842 = vpop.f32.mrb[0].mxu0
    %843 = vdwg.mxu0
    %v844 = vld [vmem:[%s5 + $0x2] sm:$0x1]
    %v845 = vlaneseq
    %v846 = vshrl.u32 %v845, 7
    %v847 = vsub.s32 0, %v846
    %v848 = vrot.slane %v844, %v847
    %v849 = vadd.f32 %v836, %v848
    %v850 = vadd.f32 %v841, %v848
    %v851 = vadd.f32 %v606, %v849
    %v852 = vadd.f32 %v607, %v850
    %v853 = vmul.f32 %v851, %v49
    %v854 = vmul.f32 %v852, %v50
    %855 = vmatprep.subr.mxu0 0.0
    %856 = vmatpush1.msra.mxu0 %v853
    %857 = vmatprep.subr.mxu0 0.0
    %858 = vmatpush1.msra.mxu0 %v854
    %859 = vmatprep.subr.mxu0 0.0
    %860 = vmatpush1.msra.mxu0 0.0
    %861 = vmatprep.subr.mxu0 0.0
    %862 = vmatpush1.msra.mxu0 0.0
    %863 = vmatprep.subr.mxu0 0.0
    %864 = vmatpush1.msra.mxu0 0.0
    %865 = vmatprep.subr.mxu0 0.0
    %866 = vmatpush1.msra.mxu0 0.0
    %867 = vmatprep.subr.mxu0 0.0
    %868 = vmatpush1.msra.mxu0 0.0
    %869 = vmatprep.subr.mxu0 0.0
    %870 = vmatpush1.msra.mxu0 0.0
    %871 = vmatprep.subr.mxu0 0.0
    %872 = vmatpush1.msra.mxu0 0.0
    %873 = vmatprep.subr.mxu0 0.0
    %874 = vmatpush1.msra.mxu0 0.0
    %875 = vmatprep.subr.mxu0 0.0
    %876 = vmatpush1.msra.mxu0 0.0
    %877 = vmatprep.subr.mxu0 0.0
    %878 = vmatpush1.msra.mxu0 0.0
    %879 = vmatprep.subr.mxu0 0.0
    %880 = vmatpush1.msra.mxu0 0.0
    %881 = vmatprep.subr.mxu0 0.0
    %882 = vmatpush1.msra.mxu0 0.0
    %883 = vmatprep.subr.mxu0 0.0
    %884 = vmatpush1.msra.mxu0 0.0
    %885 = vmatprep.subr.mxu0 0.0
    %886 = vmatpush1.msra.mxu0 0.0
    %887 = vmatprep.subr.mxu0 0.0
    %888 = vmatpush1.msra.mxu0 0.0
    %889 = vmatprep.subr.mxu0 0.0
    %890 = vmatpush1.msra.mxu0 0.0
    %891 = vmatprep.subr.mxu0 0.0
    %892 = vmatpush1.msra.mxu0 0.0
    %893 = vmatprep.subr.mxu0 0.0
    %894 = vmatpush1.msra.mxu0 0.0
    %895 = vmatprep.subr.mxu0 0.0
    %896 = vmatpush1.msra.mxu0 0.0
    %897 = vmatprep.subr.mxu0 0.0
    %898 = vmatpush1.msra.mxu0 0.0
    %899 = vmatprep.subr.mxu0 0.0
    %900 = vmatpush1.msra.mxu0 0.0
    %901 = vmatprep.subr.mxu0 0.0
    %902 = vmatpush1.msra.mxu0 0.0
    %903 = vmatprep.subr.mxu0 0.0
    %904 = vmatpush1.msra.mxu0 0.0
    %905 = vmatprep.subr.mxu0 0.0
    %906 = vmatpush1.msra.mxu0 0.0
    %907 = vmatprep.subr.mxu0 0.0
    %908 = vmatpush1.msra.mxu0 0.0
    %909 = vmatprep.subr.mxu0 0.0
    %910 = vmatpush1.msra.mxu0 0.0
    %911 = vmatprep.subr.mxu0 0.0
    %912 = vmatpush1.msra.mxu0 0.0
    %913 = vmatprep.subr.mxu0 0.0
    %914 = vmatpush1.msra.mxu0 0.0
    %915 = vmatprep.subr.mxu0 0.0
    %916 = vmatpush1.msra.mxu0 0.0
    %917 = vmatprep.subr.mxu0 0.0
    %918 = vmatpush1.msra.mxu0 0.0
    %919 = vmatprep.mubr.f32.mxu0 0.0
    %920 = vmatmul.mubr.f32.gmra.mrb[0].mxu0 %v348
    %v921 = vpop.f32.mrb[0].mxu0
    %v922 = vadd.f32 0.0, %v921
    %v923 = vpop.f32.mrb[0].mxu0
    %924 = vmatprep.mubr.f32.mxu0 0.0
    %925 = vmatmul.mubr.f32.gmra.mrb[0].mxu0 %v351
    %v926 = vpop.f32.mrb[0].mxu0
    %v927 = vadd.f32 0.0, %v926
    %v928 = vpop.f32.mrb[0].mxu0
    %929 = vdwg.mxu0
    %s930 = sld [smem:[#allocation2]]
    %vm931 = vcmp.gt.f32.partialorder %v922, 0.0
    %vm932 = vcmp.gt.f32.partialorder %v927, 0.0
    %v933 = vstv %s930
    %v934 = vmul.f32 %v933, %v922
    %v935 = vmul.f32 %v933, %v927
    %v936 = vsel %vm931, %v922, %v934
    %v937 = vsel %vm932, %v927, %v935
    %v938 = vld [vmem:[%s4 + $0x60] sm:$0xff]
    %v939 = vld [vmem:[%s4 + $0x68] sm:$0xff]
    %v940 = vld [vmem:[%s5 + $0x3] sm:$0x1]
    %v941 = vlaneseq
    %v942 = vshrl.u32 %v941, 7
    %v943 = vsub.s32 0, %v942
    %v944 = vrot.slane %v940, %v943
    %945 = vmatprep.subr.mxu0 0.0
    %946 = vmatpush1.msra.mxu0 %v938
    %947 = vmatprep.subr.mxu0 0.0
    %948 = vmatpush1.msra.mxu0 %v939
    %949 = vmatprep.subr.mxu0 0.0
    %950 = vmatpush1.msra.mxu0 0.0
    %951 = vmatprep.subr.mxu0 0.0
    %952 = vmatpush1.msra.mxu0 0.0
    %953 = vmatprep.subr.mxu0 0.0
    %954 = vmatpush1.msra.mxu0 0.0
    %955 = vmatprep.subr.mxu0 0.0
    %956 = vmatpush1.msra.mxu0 0.0
    %957 = vmatprep.subr.mxu0 0.0
    %958 = vmatpush1.msra.mxu0 0.0
    %959 = vmatprep.subr.mxu0 0.0
    %960 = vmatpush1.msra.mxu0 0.0
    %961 = vmatprep.subr.mxu0 0.0
    %962 = vmatpush1.msra.mxu0 0.0
    %963 = vmatprep.subr.mxu0 0.0
    %964 = vmatpush1.msra.mxu0 0.0
    %965 = vmatprep.subr.mxu0 0.0
    %966 = vmatpush1.msra.mxu0 0.0
    %967 = vmatprep.subr.mxu0 0.0
    %968 = vmatpush1.msra.mxu0 0.0
    %969 = vmatprep.subr.mxu0 0.0
    %970 = vmatpush1.msra.mxu0 0.0
    %971 = vmatprep.subr.mxu0 0.0
    %972 = vmatpush1.msra.mxu0 0.0
    %973 = vmatprep.subr.mxu0 0.0
    %974 = vmatpush1.msra.mxu0 0.0
    %975 = vmatprep.subr.mxu0 0.0
    %976 = vmatpush1.msra.mxu0 0.0
    %977 = vmatprep.subr.mxu0 0.0
    %978 = vmatpush1.msra.mxu0 0.0
    %979 = vmatprep.subr.mxu0 0.0
    %980 = vmatpush1.msra.mxu0 0.0
    %981 = vmatprep.subr.mxu0 0.0
    %982 = vmatpush1.msra.mxu0 0.0
    %983 = vmatprep.subr.mxu0 0.0
    %984 = vmatpush1.msra.mxu0 0.0
    %985 = vmatprep.subr.mxu0 0.0
    %986 = vmatpush1.msra.mxu0 0.0
    %987 = vmatprep.subr.mxu0 0.0
    %988 = vmatpush1.msra.mxu0 0.0
    %989 = vmatprep.subr.mxu0 0.0
    %990 = vmatpush1.msra.mxu0 0.0
    %991 = vmatprep.subr.mxu0 0.0
    %992 = vmatpush1.msra.mxu0 0.0
    %993 = vmatprep.subr.mxu0 0.0
    %994 = vmatpush1.msra.mxu0 0.0
    %995 = vmatprep.subr.mxu0 0.0
    %996 = vmatpush1.msra.mxu0 0.0
    %997 = vmatprep.subr.mxu0 0.0
    %998 = vmatpush1.msra.mxu0 0.0
    %999 = vmatprep.subr.mxu0 0.0
    %1000 = vmatpush1.msra.mxu0 0.0
    %1001 = vmatprep.subr.mxu0 0.0
    %1002 = vmatpush1.msra.mxu0 0.0
    %1003 = vmatprep.subr.mxu0 0.0
    %1004 = vmatpush1.msra.mxu0 0.0
    %1005 = vmatprep.subr.mxu0 0.0
    %1006 = vmatpush1.msra.mxu0 0.0
    %1007 = vmatprep.subr.mxu0 0.0
    %1008 = vmatpush1.msra.mxu0 0.0
    %1009 = vmatprep.mubr.f32.mxu0 0.0
    %1010 = vmatmul.mubr.f32.gmra.mrb[0].mxu0 %v183
    %v1011 = vpop.f32.mrb[0].mxu0
    %v1012 = vadd.f32 %v944, %v1011
    %v1013 = vpop.f32.mrb[0].mxu0
    %1014 = vmatprep.mubr.f32.mxu0 0.0
    %1015 = vmatmul.mubr.f32.gmra.mrb[0].mxu0 %v186
    %v1016 = vpop.f32.mrb[0].mxu0
    %v1017 = vadd.f32 %v944, %v1016
    %v1018 = vpop.f32.mrb[0].mxu0
    %1019 = vdwg.mxu0
    %s1020 = sld [smem:[#allocation2 + $0x1]]
    %vm1021 = vcmp.gt.f32.partialorder %v1012, 0.0
    %vm1022 = vcmp.gt.f32.partialorder %v1017, 0.0
    %v1023 = vstv %s1020
    %v1024 = vmul.f32 %v1023, %v1012
    %v1025 = vmul.f32 %v1023, %v1017
    %v1026 = vsel %vm1021, %v1012, %v1024
    %v1027 = vsel %vm1022, %v1017, %v1025
    %v1028 = vld [vmem:[%s4 + $0x70] sm:$0xff]
    %v1029 = vld [vmem:[%s4 + $0x78] sm:$0xff]
    %v1030 = vld [vmem:[%s4 + $0x80] sm:$0xff]
    %v1031 = vld [vmem:[%s4 + $0x88] sm:$0xff]
    %v1032 = vld [vmem:[%s5 + $0x4] sm:$0x1]
    %v1033 = vlaneseq
    %v1034 = vshrl.u32 %v1033, 7
    %v1035 = vsub.s32 0, %v1034
    %v1036 = vrot.slane %v1032, %v1035
    %v1038 = vsel %vm515, %v1026, 0
    %v1041 = vsel %vm515, %v1027, 0
    %1043 = vmatprep.subr.mxu0 0.0
    %1044 = vmatpush1.msra.mxu0 %v1028
    %1045 = vmatprep.subr.mxu0 0.0
    %1046 = vmatpush1.msra.mxu0 %v1029
    %1047 = vmatprep.subr.mxu0 0.0
    %1048 = vmatpush1.msra.mxu0 %v1030
    %1049 = vmatprep.subr.mxu0 0.0
    %1050 = vmatpush1.msra.mxu0 %v1031
    %1051 = vmatprep.subr.mxu0 0.0
    %1052 = vmatpush1.msra.mxu0 0.0
    %1053 = vmatprep.subr.mxu0 0.0
    %1054 = vmatpush1.msra.mxu0 0.0
    %1055 = vmatprep.subr.mxu0 0.0
    %1056 = vmatpush1.msra.mxu0 0.0
    %1057 = vmatprep.subr.mxu0 0.0
    %1058 = vmatpush1.msra.mxu0 0.0
    %1059 = vmatprep.subr.mxu0 0.0
    %1060 = vmatpush1.msra.mxu0 0.0
    %1061 = vmatprep.subr.mxu0 0.0
    %1062 = vmatpush1.msra.mxu0 0.0
    %1063 = vmatprep.subr.mxu0 0.0
    %1064 = vmatpush1.msra.mxu0 0.0
    %1065 = vmatprep.subr.mxu0 0.0
    %1066 = vmatpush1.msra.mxu0 0.0
    %1067 = vmatprep.subr.mxu0 0.0
    %1068 = vmatpush1.msra.mxu0 0.0
    %1069 = vmatprep.subr.mxu0 0.0
    %1070 = vmatpush1.msra.mxu0 0.0
    %1071 = vmatprep.subr.mxu0 0.0
    %1072 = vmatpush1.msra.mxu0 0.0
    %1073 = vmatprep.subr.mxu0 0.0
    %1074 = vmatpush1.msra.mxu0 0.0
    %1075 = vmatprep.subr.mxu0 0.0
    %1076 = vmatpush1.msra.mxu0 0.0
    %1077 = vmatprep.subr.mxu0 0.0
    %1078 = vmatpush1.msra.mxu0 0.0
    %1079 = vmatprep.subr.mxu0 0.0
    %1080 = vmatpush1.msra.mxu0 0.0
    %1081 = vmatprep.subr.mxu0 0.0
    %1082 = vmatpush1.msra.mxu0 0.0
    %1083 = vmatprep.subr.mxu0 0.0
    %1084 = vmatpush1.msra.mxu0 0.0
    %1085 = vmatprep.subr.mxu0 0.0
    %1086 = vmatpush1.msra.mxu0 0.0
    %1087 = vmatprep.subr.mxu0 0.0
    %1088 = vmatpush1.msra.mxu0 0.0
    %1089 = vmatprep.subr.mxu0 0.0
    %1090 = vmatpush1.msra.mxu0 0.0
    %1091 = vmatprep.subr.mxu0 0.0
    %1092 = vmatpush1.msra.mxu0 0.0
    %1093 = vmatprep.subr.mxu0 0.0
    %1094 = vmatpush1.msra.mxu0 0.0
    %1095 = vmatprep.subr.mxu0 0.0
    %1096 = vmatpush1.msra.mxu0 0.0
    %1097 = vmatprep.subr.mxu0 0.0
    %1098 = vmatpush1.msra.mxu0 0.0
    %1099 = vmatprep.subr.mxu0 0.0
    %1100 = vmatpush1.msra.mxu0 0.0
    %1101 = vmatprep.subr.mxu0 0.0
    %1102 = vmatpush1.msra.mxu0 0.0
    %1103 = vmatprep.subr.mxu0 0.0
    %1104 = vmatpush1.msra.mxu0 0.0
    %1105 = vmatprep.subr.mxu0 0.0
    %1106 = vmatpush1.msra.mxu0 0.0
    %1107 = vmatprep.mubr.f32.mxu0 0.0
    %1108 = vmatmul.mubr.f32.gmra.mrb[0].mxu0 %v1038
    %v1109 = vpop.f32.mrb[0].mxu0
    %v1110 = vadd.f32 %v1036, %v1109
    %v1111 = vpop.f32.mrb[0].mxu0
    %1112 = vmatprep.mubr.f32.mxu0 0.0
    %1113 = vmatmul.mubr.f32.gmra.mrb[0].mxu0 %v1041
    %v1114 = vpop.f32.mrb[0].mxu0
    %v1115 = vadd.f32 %v1036, %v1114
    %v1116 = vpop.f32.mrb[0].mxu0
    %1117 = vdwg.mxu0
    %s1118 = sld [smem:[#allocation2 + $0x2]]
    %vm1119 = vcmp.gt.f32.partialorder %v1110, 0.0
    %vm1120 = vcmp.gt.f32.partialorder %v1115, 0.0
    %v1121 = vstv %s1118
    %v1122 = vmul.f32 %v1121, %v1110
    %v1123 = vmul.f32 %v1121, %v1115
    %v1124 = vsel %vm1119, %v1110, %v1122
    %v1125 = vsel %vm1120, %v1115, %v1123
    %v1126 = vld [vmem:[%s4 + $0x90] sm:$0xff]
    %v1127 = vld [vmem:[%s4 + $0x98] sm:$0xff]
    %v1128 = vld [vmem:[%s4 + $0xa0] sm:$0xff]
    %v1129 = vld [vmem:[%s4 + $0xa8] sm:$0xff]
    %v1130 = vld [vmem:[%s4 + $0xb0] sm:$0xff]
    %v1131 = vld [vmem:[%s4 + $0xb8] sm:$0xff]
    %v1132 = vld [vmem:[%s4 + $0xc0] sm:$0xff]
    %v1133 = vld [vmem:[%s4 + $0xc8] sm:$0xff]
    %v1135 = vsel %vm515, %v936, 0
    %v1138 = vsel %vm515, %v937, 0
    %1140 = vmatprep.subr.mxu0 0.0
    %1141 = vmatpush1.msra.mxu0 %v1130
    %1142 = vmatprep.subr.mxu0 0.0
    %1143 = vmatpush1.msra.mxu0 %v1131
    %1144 = vmatprep.subr.mxu0 0.0
    %1145 = vmatpush1.msra.mxu0 %v1132
    %1146 = vmatprep.subr.mxu0 0.0
    %1147 = vmatpush1.msra.mxu0 %v1133
    %1148 = vmatprep.subr.mxu0 0.0
    %1149 = vmatpush1.msra.mxu0 0.0
    %1150 = vmatprep.subr.mxu0 0.0
    %1151 = vmatpush1.msra.mxu0 0.0
    %1152 = vmatprep.subr.mxu0 0.0
    %1153 = vmatpush1.msra.mxu0 0.0
    %1154 = vmatprep.subr.mxu0 0.0
    %1155 = vmatpush1.msra.mxu0 0.0
    %1156 = vmatprep.subr.mxu0 0.0
    %1157 = vmatpush1.msra.mxu0 0.0
    %1158 = vmatprep.subr.mxu0 0.0
    %1159 = vmatpush1.msra.mxu0 0.0
    %1160 = vmatprep.subr.mxu0 0.0
    %1161 = vmatpush1.msra.mxu0 0.0
    %1162 = vmatprep.subr.mxu0 0.0
    %1163 = vmatpush1.msra.mxu0 0.0
    %1164 = vmatprep.subr.mxu0 0.0
    %1165 = vmatpush1.msra.mxu0 0.0
    %1166 = vmatprep.subr.mxu0 0.0
    %1167 = vmatpush1.msra.mxu0 0.0
    %1168 = vmatprep.subr.mxu0 0.0
    %1169 = vmatpush1.msra.mxu0 0.0
    %1170 = vmatprep.subr.mxu0 0.0
    %1171 = vmatpush1.msra.mxu0 0.0
    %1172 = vmatprep.subr.mxu0 0.0
    %1173 = vmatpush1.msra.mxu0 0.0
    %1174 = vmatprep.subr.mxu0 0.0
    %1175 = vmatpush1.msra.mxu0 0.0
    %1176 = vmatprep.subr.mxu0 0.0
    %1177 = vmatpush1.msra.mxu0 0.0
    %1178 = vmatprep.subr.mxu0 0.0
    %1179 = vmatpush1.msra.mxu0 0.0
    %1180 = vmatprep.subr.mxu0 0.0
    %1181 = vmatpush1.msra.mxu0 0.0
    %1182 = vmatprep.subr.mxu0 0.0
    %1183 = vmatpush1.msra.mxu0 0.0
    %1184 = vmatprep.subr.mxu0 0.0
    %1185 = vmatpush1.msra.mxu0 0.0
    %1186 = vmatprep.subr.mxu0 0.0
    %1187 = vmatpush1.msra.mxu0 0.0
    %1188 = vmatprep.subr.mxu0 0.0
    %1189 = vmatpush1.msra.mxu0 0.0
    %1190 = vmatprep.subr.mxu0 0.0
    %1191 = vmatpush1.msra.mxu0 0.0
    %1192 = vmatprep.subr.mxu0 0.0
    %1193 = vmatpush1.msra.mxu0 0.0
    %1194 = vmatprep.subr.mxu0 0.0
    %1195 = vmatpush1.msra.mxu0 0.0
    %1196 = vmatprep.subr.mxu0 0.0
    %1197 = vmatpush1.msra.mxu0 0.0
    %1198 = vmatprep.subr.mxu0 0.0
    %1199 = vmatpush1.msra.mxu0 0.0
    %1200 = vmatprep.subr.mxu0 0.0
    %1201 = vmatpush1.msra.mxu0 0.0
    %1202 = vmatprep.subr.mxu0 0.0
    %1203 = vmatpush1.msra.mxu0 0.0
    %1204 = vmatprep.mubr.f32.mxu0 0.0
    %1205 = vmatmul.mubr.f32.gmra.mrb[0].mxu0 %v1135
    %v1206 = vpop.f32.mrb[0].mxu0
    %v1207 = vadd.f32 0.0, %v1206
    %v1208 = vpop.f32.mrb[0].mxu0
    %1209 = vmatprep.mubr.f32.mxu0 0.0
    %1210 = vmatmul.mubr.f32.gmra.mrb[0].mxu0 %v1138
    %v1211 = vpop.f32.mrb[0].mxu0
    %v1212 = vadd.f32 0.0, %v1211
    %v1213 = vpop.f32.mrb[0].mxu0
    %1214 = vdwg.mxu0
    %v1216 = vsel %vm515, %v1124, 0
    %v1219 = vsel %vm515, %v1125, 0
    %1221 = vmatprep.subr.mxu0 0.0
    %1222 = vmatpush1.msra.mxu0 %v1126
    %1223 = vmatprep.subr.mxu0 0.0
    %1224 = vmatpush1.msra.mxu0 %v1127
    %1225 = vmatprep.subr.mxu0 0.0
    %1226 = vmatpush1.msra.mxu0 %v1128
    %1227 = vmatprep.subr.mxu0 0.0
    %1228 = vmatpush1.msra.mxu0 %v1129
    %1229 = vmatprep.subr.mxu0 0.0
    %1230 = vmatpush1.msra.mxu0 0.0
    %1231 = vmatprep.subr.mxu0 0.0
    %1232 = vmatpush1.msra.mxu0 0.0
    %1233 = vmatprep.subr.mxu0 0.0
    %1234 = vmatpush1.msra.mxu0 0.0
    %1235 = vmatprep.subr.mxu0 0.0
    %1236 = vmatpush1.msra.mxu0 0.0
    %1237 = vmatprep.subr.mxu0 0.0
    %1238 = vmatpush1.msra.mxu0 0.0
    %1239 = vmatprep.subr.mxu0 0.0
    %1240 = vmatpush1.msra.mxu0 0.0
    %1241 = vmatprep.subr.mxu0 0.0
    %1242 = vmatpush1.msra.mxu0 0.0
    %1243 = vmatprep.subr.mxu0 0.0
    %1244 = vmatpush1.msra.mxu0 0.0
    %1245 = vmatprep.subr.mxu0 0.0
    %1246 = vmatpush1.msra.mxu0 0.0
    %1247 = vmatprep.subr.mxu0 0.0
    %1248 = vmatpush1.msra.mxu0 0.0
    %1249 = vmatprep.subr.mxu0 0.0
    %1250 = vmatpush1.msra.mxu0 0.0
    %1251 = vmatprep.subr.mxu0 0.0
    %1252 = vmatpush1.msra.mxu0 0.0
    %1253 = vmatprep.subr.mxu0 0.0
    %1254 = vmatpush1.msra.mxu0 0.0
    %1255 = vmatprep.subr.mxu0 0.0
    %1256 = vmatpush1.msra.mxu0 0.0
    %1257 = vmatprep.subr.mxu0 0.0
    %1258 = vmatpush1.msra.mxu0 0.0
    %1259 = vmatprep.subr.mxu0 0.0
    %1260 = vmatpush1.msra.mxu0 0.0
    %1261 = vmatprep.subr.mxu0 0.0
    %1262 = vmatpush1.msra.mxu0 0.0
    %1263 = vmatprep.subr.mxu0 0.0
    %1264 = vmatpush1.msra.mxu0 0.0
    %1265 = vmatprep.subr.mxu0 0.0
    %1266 = vmatpush1.msra.mxu0 0.0
    %1267 = vmatprep.subr.mxu0 0.0
    %1268 = vmatpush1.msra.mxu0 0.0
    %1269 = vmatprep.subr.mxu0 0.0
    %1270 = vmatpush1.msra.mxu0 0.0
    %1271 = vmatprep.subr.mxu0 0.0
    %1272 = vmatpush1.msra.mxu0 0.0
    %1273 = vmatprep.subr.mxu0 0.0
    %1274 = vmatpush1.msra.mxu0 0.0
    %1275 = vmatprep.subr.mxu0 0.0
    %1276 = vmatpush1.msra.mxu0 0.0
    %1277 = vmatprep.subr.mxu0 0.0
    %1278 = vmatpush1.msra.mxu0 0.0
    %1279 = vmatprep.subr.mxu0 0.0
    %1280 = vmatpush1.msra.mxu0 0.0
    %1281 = vmatprep.subr.mxu0 0.0
    %1282 = vmatpush1.msra.mxu0 0.0
    %1283 = vmatprep.subr.mxu0 0.0
    %1284 = vmatpush1.msra.mxu0 0.0
    %1285 = vmatprep.mubr.f32.mxu0 0.0
    %1286 = vmatmul.mubr.f32.gmra.mrb[0].mxu0 %v1216
    %v1287 = vpop.f32.mrb[0].mxu0
    %v1288 = vadd.f32 %v1207, %v1287
    %v1289 = vpop.f32.mrb[0].mxu0
    %1290 = vmatprep.mubr.f32.mxu0 0.0
    %1291 = vmatmul.mubr.f32.gmra.mrb[0].mxu0 %v1219
    %v1292 = vpop.f32.mrb[0].mxu0
    %v1293 = vadd.f32 %v1212, %v1292
    %v1294 = vpop.f32.mrb[0].mxu0
    %1295 = vdwg.mxu0
    %v1296 = vld [vmem:[%s5 + $0x5] sm:$0x1]
    %v1297 = vlaneseq
    %v1298 = vshrl.u32 %v1297, 7
    %v1299 = vsub.s32 0, %v1298
    %v1300 = vrot.slane %v1296, %v1299
    %v1301 = vadd.f32 %v1288, %v1300
    %v1302 = vadd.f32 %v1293, %v1300
    %s1303 = sld [smem:[#allocation2 + $0x3]]
    %vm1304 = vcmp.gt.f32.partialorder %v1301, 0.0
    %vm1305 = vcmp.gt.f32.partialorder %v1302, 0.0
    %v1306 = vstv %s1303
    %v1307 = vmul.f32 %v1306, %v1301
    %v1308 = vmul.f32 %v1306, %v1302
    %v1309 = vsel %vm1304, %v1301, %v1307
    %v1310 = vsel %vm1305, %v1302, %v1308
    %1311 = vst.msk [vmem:[#allocation5] sm:$0xff] %vm515, %v1309
    %1312 = vst.msk [vmem:[#allocation5 + $0x8] sm:$0xff] %vm515, %v1310
    // Predicated region
    $region30: #{mpn_forward.1} parent=1 // pred_check
      _
    $region31: #{mpn_forward.1} parent=1 // pred_check_branch
      %1314 = sbr.rel (0) target = $region33
    $region32: #{mpn_forward.1} parent=1 // pred_region
      %s1316 = ssub.s32 256, 256
      %1317 = vsyncadd [#allocation3], %s1316
      %s1318 = sshll.u32 [#allocation5], 4
      %s1319 = int_to_ptr.vmem [resolvable:$true] %s1318
      %1324 = dma.vmem_to_hbm [thread:$0]  %s1319, 256, %s6, [#allocation3], 128, 128, 8
    $region33: #{mpn_forward.1} parent=1 // pred_fallthru
      _
    // Predicated region
    $region34: #{mpn_forward.1} parent=1 // pred_check
      _
    $region35: #{mpn_forward.1} parent=1 // pred_check_branch
      %1326 = sbr.rel (0) target = $region37
    $region36: #{mpn_forward.1} parent=1 // pred_region
      %1327 = dma.done [#allocation3], 256
    $region37: #{mpn_forward.1} parent=1 // pred_fallthru
      _
    %1328 = vsyncpa [#allocation3], 1
    %1329 = vsyncpa [#allocation4], 1

</llo_original>
